<compile_context>
chip_gen: v7x
topology: tpu7x:2x2x1
jax: 0.10.0
libtpu: 0.0.40
codegen_flags: <defaults>
</compile_context>

<pallas_src>
import math

import jax
import jax.numpy as jnp
from jax import lax
from jax.experimental import pallas as pl
from jax.experimental.pallas import tpu as pltpu

# --- synthetic model dimensions (small, consistent with the module) ---
B = 2                       # batch (number of prompts)
L = 8                       # context length
D = 32                      # transformer width
N_HEADS = 4
HEAD_DIM = D // N_HEADS
N_LAYERS = 2
EMBED_DIM = 16              # text_projection output dim
LN_EPS = 1e-5
SCALE = 1.0 / math.sqrt(HEAD_DIM)
MATMUL_DTYPE = jnp.bfloat16  # MXU operand dtype; accumulation is always f32
NEG_INF = -1e30              # finite large-negative mask (safer than -inf)


def _layer_norm(x, w, b):
    # x: (rows, D) f32; w, b: (1, D) f32. LN math stays in f32.
    mu = jnp.mean(x, axis=-1, keepdims=True)
    xc = x - mu
    var = jnp.mean(xc * xc, axis=-1, keepdims=True)
    return xc * lax.rsqrt(var + LN_EPS) * w + b


# ---------------- kernel: one (sequence, layer) grid step ----------------

def encoder_kernel(eot_ref,                                   # scalar prefetch (B,) i32
                   prompts_ref, pos_ref,
                   ln1w_ref, ln1b_ref, wqkv_ref, bqkv_ref, wo_ref, bo_ref,
                   ln2w_ref, ln2b_ref, w1_ref, b1_ref, w2_ref, b2_ref,
                   lnfw_ref, lnfb_ref, proj_ref,
                   out_ref,
                   res_ref):                                  # VMEM scratch (L, D) f32
    g = pl.program_id(0)          # sequence index  (parallel axis)
    l = pl.program_id(1)          # layer index     (arbitrary axis, weights streamed)

    # ---- embed + positional at the first layer step; residual stays resident ----
    @pl.when(l == 0)
    def _init():
        res_ref[...] = prompts_ref[0] + pos_ref[...]          # (L, D) f32

    x = res_ref[...]                                          # (L, D) f32

    # causal mask, built in-kernel (tiny iota compare, no HBM mask input)
    row_i = lax.broadcasted_iota(jnp.int32, (L, L), 0)
    col_i = lax.broadcasted_iota(jnp.int32, (L, L), 1)
    mask = jnp.where(col_i <= row_i, jnp.float32(0.0), jnp.float32(NEG_INF))

    # ---- multi-head causal self-attention (pre-LN) ----
    h = _layer_norm(x, ln1w_ref[0], ln1b_ref[0])
    # fused QKV: single lane-dense (L, D) @ (D, 3D) matmul; scale already folded into Q
    qkv = jnp.dot(h.astype(MATMUL_DTYPE), wqkv_ref[0],
                  preferred_element_type=jnp.float32) + bqkv_ref[0]        # (L, 3D) f32
    qkv_b = qkv.astype(MATMUL_DTYPE)

    ctx_parts = []
    for hd in range(N_HEADS):                                 # static lane slices per head
        qh = qkv_b[:, hd * HEAD_DIM:(hd + 1) * HEAD_DIM]                   # (L, Hd)
        kh = qkv_b[:, D + hd * HEAD_DIM:D + (hd + 1) * HEAD_DIM]
        vh = qkv_b[:, 2 * D + hd * HEAD_DIM:2 * D + (hd + 1) * HEAD_DIM]
        # contract last dims directly (no explicit K transpose materialization)
        s = lax.dot_general(qh, kh, (((1,), (1,)), ((), ())),
                            preferred_element_type=jnp.float32)            # (L, L) f32
        s = s + mask
        s = s - jnp.max(s, axis=-1, keepdims=True)
        p = jnp.exp(s)
        p = p * pl.reciprocal(jnp.sum(p, axis=-1, keepdims=True), approx=True)
        ctx_parts.append(jnp.dot(p.astype(MATMUL_DTYPE), vh,
                                 preferred_element_type=jnp.float32))      # (L, Hd) f32
    ctx = jnp.concatenate(ctx_parts, axis=-1)                              # (L, D) f32

    # fused output projection: single (L, D) @ (D, D) matmul (no per-head reduce)
    attn = jnp.dot(ctx.astype(MATMUL_DTYPE), wo_ref[0],
                   preferred_element_type=jnp.float32) + bo_ref[0]
    x = x + attn

    # ---- MLP with QuickGELU (x * sigmoid(1.702 x)), as in CLIP ----
    h2 = _layer_norm(x, ln2w_ref[0], ln2b_ref[0])
    m = jnp.dot(h2.astype(MATMUL_DTYPE), w1_ref[0],
                preferred_element_type=jnp.float32) + b1_ref[0]            # (L, 4D)
    m = m * jax.nn.sigmoid(1.702 * m)
    m = jnp.dot(m.astype(MATMUL_DTYPE), w2_ref[0],
                preferred_element_type=jnp.float32) + b2_ref[0]            # (L, D)
    x = x + m
    res_ref[...] = x                                          # persist residual stream

    # ---- after the last layer: EOT gather + ln_final + text projection ----
    @pl.when(l == N_LAYERS - 1)
    def _final():
        eot = eot_ref[g]                                      # scalar EOT position (SMEM)
        col = lax.broadcasted_iota(jnp.int32, (1, L), 1)
        onehot = (col == eot).astype(jnp.float32)             # (1, L) in-kernel one-hot
        feat = jnp.dot(onehot, x, preferred_element_type=jnp.float32)       # (1, D)
        featn = _layer_norm(feat, lnfw_ref[...], lnfb_ref[...])             # ln_final
        out_ref[0] = jnp.dot(featn.astype(MATMUL_DTYPE), proj_ref[...],
                             preferred_element_type=jnp.float32).astype(out_ref.dtype)


# ---------------- wrapper ----------------

def _layer_spec(tail):
    # stacked per-layer parameter (N_LAYERS, *tail): stream layer l's slice
    return pl.BlockSpec((1,) + tuple(tail),
                        lambda g, l, eot, _n=len(tail): (l,) + (0,) * _n)


def _const_spec(shape):
    # layer-independent parameter: resident across the whole grid
    return pl.BlockSpec(tuple(shape), lambda g, l, eot, _n=len(shape): (0,) * _n)


def text_encoder(prompts, tokenized_prompts, params):
    eot_idx = jnp.argmax(tokenized_prompts, axis=-1).astype(jnp.int32)      # (B,)
    prompts_f32 = prompts.astype(jnp.float32)

    in_specs = [
        pl.BlockSpec((1, L, D), lambda g, l, eot: (g, 0, 0)),   # prompts (per sequence)
        _const_spec((L, D)),                                    # positional embedding
        _layer_spec((1, D)),        # ln1_w
        _layer_spec((1, D)),        # ln1_b
        _layer_spec((D, 3 * D)),    # wqkv (fused, scale folded into Q)
        _layer_spec((1, 3 * D)),    # bqkv
        _layer_spec((D, D)),        # wo
        _layer_spec((1, D)),        # bo
        _layer_spec((1, D)),        # ln2_w
        _layer_spec((1, D)),        # ln2_b
        _layer_spec((D, 4 * D)),    # w1
        _layer_spec((1, 4 * D)),    # b1
        _layer_spec((4 * D, D)),    # w2
        _layer_spec((1, D)),        # b2
        _const_spec((1, D)),        # ln_final_w
        _const_spec((1, D)),        # ln_final_b
        _const_spec((D, EMBED_DIM)),  # text_projection
    ]
    # output block index constant across the layer axis -> written once at the last layer
    out_specs = pl.BlockSpec((1, 1, EMBED_DIM), lambda g, l, eot: (g, 0, 0))

    out3 = pl.pallas_call(
        encoder_kernel,
        out_shape=jax.ShapeDtypeStruct((B, 1, EMBED_DIM), jnp.float32),
        grid_spec=pltpu.PrefetchScalarGridSpec(
            num_scalar_prefetch=1,                 # EOT indices -> SMEM
            grid=(B, N_LAYERS),                    # (sequence, layer)
            in_specs=in_specs,
            out_specs=out_specs,
            scratch_shapes=[pltpu.VMEM((L, D), jnp.float32)],   # resident residual stream
        ),
        compiler_params=pltpu.CompilerParams(
            dimension_semantics=("parallel", "arbitrary"),
            vmem_limit_bytes=32 * 1024 * 1024,     # headroom for double-buffered weights
        ),
    )(eot_idx, prompts_f32,
      params["pos_emb"],
      params["ln1_w"], params["ln1_b"],
      params["wqkv"], params["bqkv"],
      params["wo"], params["bo"],
      params["ln2_w"], params["ln2_b"],
      params["w1"], params["b1"],
      params["w2"], params["b2"],
      params["ln_final_w"], params["ln_final_b"],
      params["text_projection"])
    return out3.reshape(B, EMBED_DIM)


# ---------------- deterministic parameter init ----------------

def init_params(key):
    def normal(k, shape, scale=0.02):
        return jax.random.normal(k, shape, jnp.float32) * scale

    ks = jax.random.split(key, 10)
    # Weights are stored in (in, out) orientation, i.e. transposed from PyTorch's
    # nn.Linear / in_proj (out, in) layout -- verify at real-checkpoint loading time.
    wqkv = normal(ks[0], (N_LAYERS, D, 3 * D))
    bqkv = normal(ks[1], (N_LAYERS, 1, 3 * D))
    # fold the 1/sqrt(head_dim) attention scale into the Q projection (columns [0, D))
    wqkv = wqkv.at[:, :, :D].multiply(SCALE)
    bqkv = bqkv.at[:, :, :D].multiply(SCALE)

    return {
        "pos_emb": normal(ks[2], (L, D), 0.01),
        "ln1_w": jnp.ones((N_LAYERS, 1, D), jnp.float32),
        "ln1_b": jnp.zeros((N_LAYERS, 1, D), jnp.float32),
        "wqkv": wqkv.astype(MATMUL_DTYPE),
        "bqkv": bqkv,
        "wo": normal(ks[3], (N_LAYERS, D, D)).astype(MATMUL_DTYPE),
        "bo": normal(ks[4], (N_LAYERS, 1, D)),
        "ln2_w": jnp.ones((N_LAYERS, 1, D), jnp.float32),
        "ln2_b": jnp.zeros((N_LAYERS, 1, D), jnp.float32),
        "w1": normal(ks[5], (N_LAYERS, D, 4 * D)).astype(MATMUL_DTYPE),
        "b1": normal(ks[6], (N_LAYERS, 1, 4 * D)),
        "w2": normal(ks[7], (N_LAYERS, 4 * D, D)).astype(MATMUL_DTYPE),
        "b2": normal(ks[8], (N_LAYERS, 1, D)),
        "ln_final_w": jnp.ones((1, D), jnp.float32),
        "ln_final_b": jnp.zeros((1, D), jnp.float32),
        "text_projection": normal(ks[9], (D, EMBED_DIM)).astype(MATMUL_DTYPE),
    }


if __name__ == "__main__":
    key = jax.random.PRNGKey(0)
    k_prompts, k_params = jax.random.split(key)

    prompts = jax.random.normal(k_prompts, (B, L, D), jnp.float32) * 0.1
    # synthetic tokenized prompts; 49407 plays the role of the EOT token (max id)
    tokenized_prompts = jnp.array(
        [[49406, 320, 1125, 49407, 0, 0, 0, 0],
         [49406, 320, 1125, 539, 1929, 49407, 0, 0]], dtype=jnp.int32)

    params = init_params(k_params)

    out = jax.jit(text_encoder)(prompts, tokenized_prompts, params)
    jax.block_until_ready(out)
    assert out.shape == (B, EMBED_DIM), out.shape
    assert bool(jnp.all(jnp.isfinite(out))), "non-finite output"
    print("KERNEL_OK")
</pallas_src>

<mosaic_0001>
module attributes {stable_mosaic.version = 11 : i64} {
  func.func @encoder_kernel(%arg0: i32, %arg1: i32, %arg2: memref<2xi32, #tpu.memory_space<smem>>, %arg3: memref<1x8x32xf32, #tpu.memory_space<vmem>>, %arg4: memref<8x32xf32, #tpu.memory_space<vmem>>, %arg5: memref<1x1x32xf32, #tpu.memory_space<vmem>>, %arg6: memref<1x1x32xf32, #tpu.memory_space<vmem>>, %arg7: memref<1x32x96xbf16, #tpu.memory_space<vmem>>, %arg8: memref<1x1x96xf32, #tpu.memory_space<vmem>>, %arg9: memref<1x32x32xbf16, #tpu.memory_space<vmem>>, %arg10: memref<1x1x32xf32, #tpu.memory_space<vmem>>, %arg11: memref<1x1x32xf32, #tpu.memory_space<vmem>>, %arg12: memref<1x1x32xf32, #tpu.memory_space<vmem>>, %arg13: memref<1x32x128xbf16, #tpu.memory_space<vmem>>, %arg14: memref<1x1x128xf32, #tpu.memory_space<vmem>>, %arg15: memref<1x128x32xbf16, #tpu.memory_space<vmem>>, %arg16: memref<1x1x32xf32, #tpu.memory_space<vmem>>, %arg17: memref<1x32xf32, #tpu.memory_space<vmem>>, %arg18: memref<1x32xf32, #tpu.memory_space<vmem>>, %arg19: memref<32x16xbf16, #tpu.memory_space<vmem>>, %arg20: memref<1x1x16xf32, #tpu.memory_space<vmem>>, %arg21: memref<8x32xf32, #tpu.memory_space<vmem>>) attributes {dimension_semantics = [#tpu.dimension_semantics<parallel>, #tpu.dimension_semantics<arbitrary>], iteration_bounds = array<i64: 2, 2>, scalar_prefetch = 1 : i64, scratch_operands = 1 : i64, tpu.core_type = #tpu.core_type<tc>, window_params = [{transform_indices = @transform_0, window_bounds = array<i64: 1, 8, 32>}, {pipeline_mode = #tpu.pipeline_mode<synchronous>, transform_indices = @transform_1, window_bounds = array<i64: 8, 32>}, {transform_indices = @transform_2, window_bounds = array<i64: 1, 1, 32>}, {transform_indices = @transform_3, window_bounds = array<i64: 1, 1, 32>}, {transform_indices = @transform_4, window_bounds = array<i64: 1, 32, 96>}, {transform_indices = @transform_5, window_bounds = array<i64: 1, 1, 96>}, {transform_indices = @transform_6, window_bounds = array<i64: 1, 32, 32>}, {transform_indices = @transform_7, window_bounds = array<i64: 1, 1, 32>}, {transform_indices = @transform_8, window_bounds = array<i64: 1, 1, 32>}, {transform_indices = @transform_9, window_bounds = array<i64: 1, 1, 32>}, {transform_indices = @transform_10, window_bounds = array<i64: 1, 32, 128>}, {transform_indices = @transform_11, window_bounds = array<i64: 1, 1, 128>}, {transform_indices = @transform_12, window_bounds = array<i64: 1, 128, 32>}, {transform_indices = @transform_13, window_bounds = array<i64: 1, 1, 32>}, {pipeline_mode = #tpu.pipeline_mode<synchronous>, transform_indices = @transform_14, window_bounds = array<i64: 1, 32>}, {pipeline_mode = #tpu.pipeline_mode<synchronous>, transform_indices = @transform_15, window_bounds = array<i64: 1, 32>}, {pipeline_mode = #tpu.pipeline_mode<synchronous>, transform_indices = @transform_16, window_bounds = array<i64: 32, 16>}, {transform_indices = @transform_17, window_bounds = array<i64: 1, 1, 16>}]} {
    %c0_i32 = arith.constant 0 : i32
    %0 = arith.cmpi eq, %arg1, %c0_i32 : i32
    %1 = arith.extui %0 : i1 to i32
    %c0_i32_0 = arith.constant 0 : i32
    %2 = arith.cmpi ne, %1, %c0_i32_0 : i32
    scf.if %2 {
      %c0_74 = arith.constant 0 : index
      %c0_75 = arith.constant 0 : index
      %c0_76 = arith.constant 0 : index
      %174 = vector.load %arg3[%c0_74, %c0_75, %c0_76] : memref<1x8x32xf32, #tpu.memory_space<vmem>>, vector<1x8x32xf32>
      %175 = vector.shape_cast %174 : vector<1x8x32xf32> to vector<8x32xf32>
      %c0_77 = arith.constant 0 : index
      %c0_78 = arith.constant 0 : index
      %176 = vector.load %arg4[%c0_77, %c0_78] : memref<8x32xf32, #tpu.memory_space<vmem>>, vector<8x32xf32>
      %177 = arith.addf %175, %176 : vector<8x32xf32>
      %c0_79 = arith.constant 0 : index
      %c0_80 = arith.constant 0 : index
      %178 = vector.load %arg21[%c0_79, %c0_80] : memref<8x32xf32, #tpu.memory_space<vmem>>, vector<8x32xf32>
      tpu.vector_store %arg21[%c0_79, %c0_80], %177 {strides = array<i32>} : memref<8x32xf32, #tpu.memory_space<vmem>>, vector<8x32xf32>,
    } else {
    }
    %c0 = arith.constant 0 : index
    %c0_1 = arith.constant 0 : index
    %3 = vector.load %arg21[%c0, %c0_1] : memref<8x32xf32, #tpu.memory_space<vmem>>, vector<8x32xf32>
    %4 = tpu.iota {dimensions = array<i32: 0>} : vector<8x8xi32>
    %5 = tpu.iota {dimensions = array<i32: 1>} : vector<8x8xi32>
    %6 = arith.cmpi sle, %5, %4 : vector<8x8xi32>
    %cst = arith.constant 0.000000e+00 : f32
    %cst_2 = arith.constant -1.000000e+30 : f32
    %7 = vector.broadcast %cst : f32 to vector<8x8xf32>
    %8 = vector.broadcast %cst_2 : f32 to vector<8x8xf32>
    %9 = arith.select %6, %7, %8 : vector<8x8xi1>, vector<8x8xf32>
    %c0_3 = arith.constant 0 : index
    %c0_4 = arith.constant 0 : index
    %c0_5 = arith.constant 0 : index
    %10 = vector.load %arg5[%c0_3, %c0_4, %c0_5] : memref<1x1x32xf32, #tpu.memory_space<vmem>>, vector<1x1x32xf32>
    %11 = vector.shape_cast %10 : vector<1x1x32xf32> to vector<1x32xf32>
    %c0_6 = arith.constant 0 : index
    %c0_7 = arith.constant 0 : index
    %c0_8 = arith.constant 0 : index
    %12 = vector.load %arg6[%c0_6, %c0_7, %c0_8] : memref<1x1x32xf32, #tpu.memory_space<vmem>>, vector<1x1x32xf32>
    %13 = vector.shape_cast %12 : vector<1x1x32xf32> to vector<1x32xf32>
    %cst_9 = arith.constant dense<0.000000e+00> : vector<8xf32>
    %14 = vector.multi_reduction <add>, %3, %cst_9 [1] : vector<8x32xf32> to vector<8xf32>
    %15 = vector.shape_cast %14 : vector<8xf32> to vector<8x1xf32>
    %cst_10 = arith.constant 3.200000e+01 : f32
    %16 = vector.broadcast %cst_10 : f32 to vector<8x1xf32>
    %17 = arith.divf %15, %16 : vector<8x1xf32>
    %18 = vector.broadcast %17 : vector<8x1xf32> to vector<8x32xf32>
    %19 = arith.subf %3, %18 : vector<8x32xf32>
    %20 = arith.mulf %19, %19 : vector<8x32xf32>
    %cst_11 = arith.constant dense<0.000000e+00> : vector<8xf32>
    %21 = vector.multi_reduction <add>, %20, %cst_11 [1] : vector<8x32xf32> to vector<8xf32>
    %22 = vector.shape_cast %21 : vector<8xf32> to vector<8x1xf32>
    %cst_12 = arith.constant 3.200000e+01 : f32
    %23 = vector.broadcast %cst_12 : f32 to vector<8x1xf32>
    %24 = arith.divf %22, %23 : vector<8x1xf32>
    %cst_13 = arith.constant 9.99999974E-6 : f32
    %25 = vector.broadcast %cst_13 : f32 to vector<8x1xf32>
    %26 = arith.addf %24, %25 : vector<8x1xf32>
    %27 = math.rsqrt %26 : vector<8x1xf32>
    %28 = vector.broadcast %27 : vector<8x1xf32> to vector<8x32xf32>
    %29 = arith.mulf %19, %28 : vector<8x32xf32>
    %30 = vector.broadcast %11 : vector<1x32xf32> to vector<8x32xf32>
    %31 = arith.mulf %29, %30 : vector<8x32xf32>
    %32 = vector.broadcast %13 : vector<1x32xf32> to vector<8x32xf32>
    %33 = arith.addf %31, %32 : vector<8x32xf32>
    %34 = arith.truncf %33 : vector<8x32xf32> to vector<8x32xbf16>
    %c0_14 = arith.constant 0 : index
    %c0_15 = arith.constant 0 : index
    %c0_16 = arith.constant 0 : index
    %35 = vector.load %arg7[%c0_14, %c0_15, %c0_16] : memref<1x32x96xbf16, #tpu.memory_space<vmem>>, vector<1x32x96xbf16>
    %36 = vector.shape_cast %35 : vector<1x32x96xbf16> to vector<32x96xbf16>
    %cst_17 = arith.constant dense<0.000000e+00> : vector<8x96xf32>
    %37 = tpu.matmul %34, %36, %cst_17 {dimension_numbers = #tpu.dot_dimension_numbers<[1], [0], [0], [1], [0, 0, 1, 1], [], []>} : vector<8x32xbf16>, vector<32x96xbf16>, vector<8x96xf32> -> vector<8x96xf32>
    %c0_18 = arith.constant 0 : index
    %c0_19 = arith.constant 0 : index
    %c0_20 = arith.constant 0 : index
    %38 = vector.load %arg8[%c0_18, %c0_19, %c0_20] : memref<1x1x96xf32, #tpu.memory_space<vmem>>, vector<1x1x96xf32>
    %39 = vector.shape_cast %38 : vector<1x1x96xf32> to vector<1x96xf32>
    %40 = vector.broadcast %39 : vector<1x96xf32> to vector<8x96xf32>
    %41 = arith.addf %37, %40 : vector<8x96xf32>
    %42 = arith.truncf %41 : vector<8x96xf32> to vector<8x96xbf16>
    %43 = vector.extract_strided_slice %42 {offsets = [0, 0], sizes = [8, 8], strides = [1, 1]} : vector<8x96xbf16> to vector<8x8xbf16>
    %44 = vector.extract_strided_slice %42 {offsets = [0, 32], sizes = [8, 8], strides = [1, 1]} : vector<8x96xbf16> to vector<8x8xbf16>
    %45 = vector.extract_strided_slice %42 {offsets = [0, 64], sizes = [8, 8], strides = [1, 1]} : vector<8x96xbf16> to vector<8x8xbf16>
    %cst_21 = arith.constant dense<0.000000e+00> : vector<8x8xf32>
    %46 = tpu.matmul %43, %44, %cst_21 {dimension_numbers = #tpu.dot_dimension_numbers<[1], [1], [0], [0], [0, 0, 1, 0], [], []>} : vector<8x8xbf16>, vector<8x8xbf16>, vector<8x8xf32> -> vector<8x8xf32>
    %47 = arith.addf %46, %9 : vector<8x8xf32>
    %cst_22 = arith.constant dense<0xFF800000> : vector<8xf32>
    %48 = vector.multi_reduction <maximumf>, %47, %cst_22 [1] : vector<8x8xf32> to vector<8xf32>
    %49 = vector.shape_cast %48 : vector<8xf32> to vector<8x1xf32>
    %50 = vector.broadcast %49 : vector<8x1xf32> to vector<8x8xf32>
    %51 = arith.subf %47, %50 : vector<8x8xf32>
    %52 = math.exp %51 : vector<8x8xf32>
    %cst_23 = arith.constant dense<0.000000e+00> : vector<8xf32>
    %53 = vector.multi_reduction <add>, %52, %cst_23 [1] : vector<8x8xf32> to vector<8xf32>
    %54 = vector.shape_cast %53 : vector<8xf32> to vector<8x1xf32>
    %55 = tpu.reciprocal %54 {approx = true} : vector<8x1xf32> -> vector<8x1xf32>
    %56 = vector.broadcast %55 : vector<8x1xf32> to vector<8x8xf32>
    %57 = arith.mulf %52, %56 : vector<8x8xf32>
    %58 = arith.truncf %57 : vector<8x8xf32> to vector<8x8xbf16>
    %cst_24 = arith.constant dense<0.000000e+00> : vector<8x8xf32>
    %59 = tpu.matmul %58, %45, %cst_24 {dimension_numbers = #tpu.dot_dimension_numbers<[1], [0], [0], [1], [0, 0, 1, 1], [], []>} : vector<8x8xbf16>, vector<8x8xbf16>, vector<8x8xf32> -> vector<8x8xf32>
    %60 = vector.extract_strided_slice %42 {offsets = [0, 8], sizes = [8, 8], strides = [1, 1]} : vector<8x96xbf16> to vector<8x8xbf16>
    %61 = vector.extract_strided_slice %42 {offsets = [0, 40], sizes = [8, 8], strides = [1, 1]} : vector<8x96xbf16> to vector<8x8xbf16>
    %62 = vector.extract_strided_slice %42 {offsets = [0, 72], sizes = [8, 8], strides = [1, 1]} : vector<8x96xbf16> to vector<8x8xbf16>
    %cst_25 = arith.constant dense<0.000000e+00> : vector<8x8xf32>
    %63 = tpu.matmul %60, %61, %cst_25 {dimension_numbers = #tpu.dot_dimension_numbers<[1], [1], [0], [0], [0, 0, 1, 0], [], []>} : vector<8x8xbf16>, vector<8x8xbf16>, vector<8x8xf32> -> vector<8x8xf32>
    %64 = arith.addf %63, %9 : vector<8x8xf32>
    %cst_26 = arith.constant dense<0xFF800000> : vector<8xf32>
    %65 = vector.multi_reduction <maximumf>, %64, %cst_26 [1] : vector<8x8xf32> to vector<8xf32>
    %66 = vector.shape_cast %65 : vector<8xf32> to vector<8x1xf32>
    %67 = vector.broadcast %66 : vector<8x1xf32> to vector<8x8xf32>
    %68 = arith.subf %64, %67 : vector<8x8xf32>
    %69 = math.exp %68 : vector<8x8xf32>
    %cst_27 = arith.constant dense<0.000000e+00> : vector<8xf32>
    %70 = vector.multi_reduction <add>, %69, %cst_27 [1] : vector<8x8xf32> to vector<8xf32>
    %71 = vector.shape_cast %70 : vector<8xf32> to vector<8x1xf32>
    %72 = tpu.reciprocal %71 {approx = true} : vector<8x1xf32> -> vector<8x1xf32>
    %73 = vector.broadcast %72 : vector<8x1xf32> to vector<8x8xf32>
    %74 = arith.mulf %69, %73 : vector<8x8xf32>
    %75 = arith.truncf %74 : vector<8x8xf32> to vector<8x8xbf16>
    %cst_28 = arith.constant dense<0.000000e+00> : vector<8x8xf32>
    %76 = tpu.matmul %75, %62, %cst_28 {dimension_numbers = #tpu.dot_dimension_numbers<[1], [0], [0], [1], [0, 0, 1, 1], [], []>} : vector<8x8xbf16>, vector<8x8xbf16>, vector<8x8xf32> -> vector<8x8xf32>
    %77 = vector.extract_strided_slice %42 {offsets = [0, 16], sizes = [8, 8], strides = [1, 1]} : vector<8x96xbf16> to vector<8x8xbf16>
    %78 = vector.extract_strided_slice %42 {offsets = [0, 48], sizes = [8, 8], strides = [1, 1]} : vector<8x96xbf16> to vector<8x8xbf16>
    %79 = vector.extract_strided_slice %42 {offsets = [0, 80], sizes = [8, 8], strides = [1, 1]} : vector<8x96xbf16> to vector<8x8xbf16>
    %cst_29 = arith.constant dense<0.000000e+00> : vector<8x8xf32>
    %80 = tpu.matmul %77, %78, %cst_29 {dimension_numbers = #tpu.dot_dimension_numbers<[1], [1], [0], [0], [0, 0, 1, 0], [], []>} : vector<8x8xbf16>, vector<8x8xbf16>, vector<8x8xf32> -> vector<8x8xf32>
    %81 = arith.addf %80, %9 : vector<8x8xf32>
    %cst_30 = arith.constant dense<0xFF800000> : vector<8xf32>
    %82 = vector.multi_reduction <maximumf>, %81, %cst_30 [1] : vector<8x8xf32> to vector<8xf32>
    %83 = vector.shape_cast %82 : vector<8xf32> to vector<8x1xf32>
    %84 = vector.broadcast %83 : vector<8x1xf32> to vector<8x8xf32>
    %85 = arith.subf %81, %84 : vector<8x8xf32>
    %86 = math.exp %85 : vector<8x8xf32>
    %cst_31 = arith.constant dense<0.000000e+00> : vector<8xf32>
    %87 = vector.multi_reduction <add>, %86, %cst_31 [1] : vector<8x8xf32> to vector<8xf32>
    %88 = vector.shape_cast %87 : vector<8xf32> to vector<8x1xf32>
    %89 = tpu.reciprocal %88 {approx = true} : vector<8x1xf32> -> vector<8x1xf32>
    %90 = vector.broadcast %89 : vector<8x1xf32> to vector<8x8xf32>
    %91 = arith.mulf %86, %90 : vector<8x8xf32>
    %92 = arith.truncf %91 : vector<8x8xf32> to vector<8x8xbf16>
    %cst_32 = arith.constant dense<0.000000e+00> : vector<8x8xf32>
    %93 = tpu.matmul %92, %79, %cst_32 {dimension_numbers = #tpu.dot_dimension_numbers<[1], [0], [0], [1], [0, 0, 1, 1], [], []>} : vector<8x8xbf16>, vector<8x8xbf16>, vector<8x8xf32> -> vector<8x8xf32>
    %94 = vector.extract_strided_slice %42 {offsets = [0, 24], sizes = [8, 8], strides = [1, 1]} : vector<8x96xbf16> to vector<8x8xbf16>
    %95 = vector.extract_strided_slice %42 {offsets = [0, 56], sizes = [8, 8], strides = [1, 1]} : vector<8x96xbf16> to vector<8x8xbf16>
    %96 = vector.extract_strided_slice %42 {offsets = [0, 88], sizes = [8, 8], strides = [1, 1]} : vector<8x96xbf16> to vector<8x8xbf16>
    %cst_33 = arith.constant dense<0.000000e+00> : vector<8x8xf32>
    %97 = tpu.matmul %94, %95, %cst_33 {dimension_numbers = #tpu.dot_dimension_numbers<[1], [1], [0], [0], [0, 0, 1, 0], [], []>} : vector<8x8xbf16>, vector<8x8xbf16>, vector<8x8xf32> -> vector<8x8xf32>
    %98 = arith.addf %97, %9 : vector<8x8xf32>
    %cst_34 = arith.constant dense<0xFF800000> : vector<8xf32>
    %99 = vector.multi_reduction <maximumf>, %98, %cst_34 [1] : vector<8x8xf32> to vector<8xf32>
    %100 = vector.shape_cast %99 : vector<8xf32> to vector<8x1xf32>
    %101 = vector.broadcast %100 : vector<8x1xf32> to vector<8x8xf32>
    %102 = arith.subf %98, %101 : vector<8x8xf32>
    %103 = math.exp %102 : vector<8x8xf32>
    %cst_35 = arith.constant dense<0.000000e+00> : vector<8xf32>
    %104 = vector.multi_reduction <add>, %103, %cst_35 [1] : vector<8x8xf32> to vector<8xf32>
    %105 = vector.shape_cast %104 : vector<8xf32> to vector<8x1xf32>
    %106 = tpu.reciprocal %105 {approx = true} : vector<8x1xf32> -> vector<8x1xf32>
    %107 = vector.broadcast %106 : vector<8x1xf32> to vector<8x8xf32>
    %108 = arith.mulf %103, %107 : vector<8x8xf32>
    %109 = arith.truncf %108 : vector<8x8xf32> to vector<8x8xbf16>
    %cst_36 = arith.constant dense<0.000000e+00> : vector<8x8xf32>
    %110 = tpu.matmul %109, %96, %cst_36 {dimension_numbers = #tpu.dot_dimension_numbers<[1], [0], [0], [1], [0, 0, 1, 1], [], []>} : vector<8x8xbf16>, vector<8x8xbf16>, vector<8x8xf32> -> vector<8x8xf32>
    %111 = tpu.concatenate %59, %76, %93, %110 in 1 : vector<8x8xf32>, vector<8x8xf32>, vector<8x8xf32>, vector<8x8xf32> -> vector<8x32xf32>
    %112 = arith.truncf %111 : vector<8x32xf32> to vector<8x32xbf16>
    %c0_37 = arith.constant 0 : index
    %c0_38 = arith.constant 0 : index
    %c0_39 = arith.constant 0 : index
    %113 = vector.load %arg9[%c0_37, %c0_38, %c0_39] : memref<1x32x32xbf16, #tpu.memory_space<vmem>>, vector<1x32x32xbf16>
    %114 = vector.shape_cast %113 : vector<1x32x32xbf16> to vector<32x32xbf16>
    %cst_40 = arith.constant dense<0.000000e+00> : vector<8x32xf32>
    %115 = tpu.matmul %112, %114, %cst_40 {dimension_numbers = #tpu.dot_dimension_numbers<[1], [0], [0], [1], [0, 0, 1, 1], [], []>} : vector<8x32xbf16>, vector<32x32xbf16>, vector<8x32xf32> -> vector<8x32xf32>
    %c0_41 = arith.constant 0 : index
    %c0_42 = arith.constant 0 : index
    %c0_43 = arith.constant 0 : index
    %116 = vector.load %arg10[%c0_41, %c0_42, %c0_43] : memref<1x1x32xf32, #tpu.memory_space<vmem>>, vector<1x1x32xf32>
    %117 = vector.shape_cast %116 : vector<1x1x32xf32> to vector<1x32xf32>
    %118 = vector.broadcast %117 : vector<1x32xf32> to vector<8x32xf32>
    %119 = arith.addf %115, %118 : vector<8x32xf32>
    %120 = arith.addf %3, %119 : vector<8x32xf32>
    %c0_44 = arith.constant 0 : index
    %c0_45 = arith.constant 0 : index
    %c0_46 = arith.constant 0 : index
    %121 = vector.load %arg11[%c0_44, %c0_45, %c0_46] : memref<1x1x32xf32, #tpu.memory_space<vmem>>, vector<1x1x32xf32>
    %122 = vector.shape_cast %121 : vector<1x1x32xf32> to vector<1x32xf32>
    %c0_47 = arith.constant 0 : index
    %c0_48 = arith.constant 0 : index
    %c0_49 = arith.constant 0 : index
    %123 = vector.load %arg12[%c0_47, %c0_48, %c0_49] : memref<1x1x32xf32, #tpu.memory_space<vmem>>, vector<1x1x32xf32>
    %124 = vector.shape_cast %123 : vector<1x1x32xf32> to vector<1x32xf32>
    %cst_50 = arith.constant dense<0.000000e+00> : vector<8xf32>
    %125 = vector.multi_reduction <add>, %120, %cst_50 [1] : vector<8x32xf32> to vector<8xf32>
    %126 = vector.shape_cast %125 : vector<8xf32> to vector<8x1xf32>
    %cst_51 = arith.constant 3.200000e+01 : f32
    %127 = vector.broadcast %cst_51 : f32 to vector<8x1xf32>
    %128 = arith.divf %126, %127 : vector<8x1xf32>
    %129 = vector.broadcast %128 : vector<8x1xf32> to vector<8x32xf32>
    %130 = arith.subf %120, %129 : vector<8x32xf32>
    %131 = arith.mulf %130, %130 : vector<8x32xf32>
    %cst_52 = arith.constant dense<0.000000e+00> : vector<8xf32>
    %132 = vector.multi_reduction <add>, %131, %cst_52 [1] : vector<8x32xf32> to vector<8xf32>
    %133 = vector.shape_cast %132 : vector<8xf32> to vector<8x1xf32>
    %cst_53 = arith.constant 3.200000e+01 : f32
    %134 = vector.broadcast %cst_53 : f32 to vector<8x1xf32>
    %135 = arith.divf %133, %134 : vector<8x1xf32>
    %cst_54 = arith.constant 9.99999974E-6 : f32
    %136 = vector.broadcast %cst_54 : f32 to vector<8x1xf32>
    %137 = arith.addf %135, %136 : vector<8x1xf32>
    %138 = math.rsqrt %137 : vector<8x1xf32>
    %139 = vector.broadcast %138 : vector<8x1xf32> to vector<8x32xf32>
    %140 = arith.mulf %130, %139 : vector<8x32xf32>
    %141 = vector.broadcast %122 : vector<1x32xf32> to vector<8x32xf32>
    %142 = arith.mulf %140, %141 : vector<8x32xf32>
    %143 = vector.broadcast %124 : vector<1x32xf32> to vector<8x32xf32>
    %144 = arith.addf %142, %143 : vector<8x32xf32>
    %145 = arith.truncf %144 : vector<8x32xf32> to vector<8x32xbf16>
    %c0_55 = arith.constant 0 : index
    %c0_56 = arith.constant 0 : index
    %c0_57 = arith.constant 0 : index
    %146 = vector.load %arg13[%c0_55, %c0_56, %c0_57] : memref<1x32x128xbf16, #tpu.memory_space<vmem>>, vector<1x32x128xbf16>
    %147 = vector.shape_cast %146 : vector<1x32x128xbf16> to vector<32x128xbf16>
    %cst_58 = arith.constant dense<0.000000e+00> : vector<8x128xf32>
    %148 = tpu.matmul %145, %147, %cst_58 {dimension_numbers = #tpu.dot_dimension_numbers<[1], [0], [0], [1], [0, 0, 1, 1], [], []>} : vector<8x32xbf16>, vector<32x128xbf16>, vector<8x128xf32> -> vector<8x128xf32>
    %c0_59 = arith.constant 0 : index
    %c0_60 = arith.constant 0 : index
    %c0_61 = arith.constant 0 : index
    %149 = vector.load %arg14[%c0_59, %c0_60, %c0_61] : memref<1x1x128xf32, #tpu.memory_space<vmem>>, vector<1x1x128xf32>
    %150 = vector.shape_cast %149 : vector<1x1x128xf32> to vector<1x128xf32>
    %151 = vector.broadcast %150 : vector<1x128xf32> to vector<8x128xf32>
    %152 = arith.addf %148, %151 : vector<8x128xf32>
    %cst_62 = arith.constant 1.702000e+00 : f32
    %153 = vector.broadcast %cst_62 : f32 to vector<8x128xf32>
    %154 = arith.mulf %153, %152 : vector<8x128xf32>
    %155 = arith.negf %154 : vector<8x128xf32>
    %156 = math.exp %155 : vector<8x128xf32>
    %cst_63 = arith.constant 1.000000e+00 : f32
    %157 = vector.broadcast %cst_63 : f32 to vector<8x128xf32>
    %158 = arith.addf %157, %156 : vector<8x128xf32>
    %159 = arith.divf %157, %158 : vector<8x128xf32>
    %160 = arith.mulf %152, %159 : vector<8x128xf32>
    %161 = arith.truncf %160 : vector<8x128xf32> to vector<8x128xbf16>
    %c0_64 = arith.constant 0 : index
    %c0_65 = arith.constant 0 : index
    %c0_66 = arith.constant 0 : index
    %162 = vector.load %arg15[%c0_64, %c0_65, %c0_66] : memref<1x128x32xbf16, #tpu.memory_space<vmem>>, vector<1x128x32xbf16>
    %163 = vector.shape_cast %162 : vector<1x128x32xbf16> to vector<128x32xbf16>
    %cst_67 = arith.constant dense<0.000000e+00> : vector<8x32xf32>
    %164 = tpu.matmul %161, %163, %cst_67 {dimension_numbers = #tpu.dot_dimension_numbers<[1], [0], [0], [1], [0, 0, 1, 1], [], []>} : vector<8x128xbf16>, vector<128x32xbf16>, vector<8x32xf32> -> vector<8x32xf32>
    %c0_68 = arith.constant 0 : index
    %c0_69 = arith.constant 0 : index
    %c0_70 = arith.constant 0 : index
    %165 = vector.load %arg16[%c0_68, %c0_69, %c0_70] : memref<1x1x32xf32, #tpu.memory_space<vmem>>, vector<1x1x32xf32>
    %166 = vector.shape_cast %165 : vector<1x1x32xf32> to vector<1x32xf32>
    %167 = vector.broadcast %166 : vector<1x32xf32> to vector<8x32xf32>
    %168 = arith.addf %164, %167 : vector<8x32xf32>
    %169 = arith.addf %120, %168 : vector<8x32xf32>
    %c0_71 = arith.constant 0 : index
    %c0_72 = arith.constant 0 : index
    %170 = vector.load %arg21[%c0_71, %c0_72] : memref<8x32xf32, #tpu.memory_space<vmem>>, vector<8x32xf32>
    tpu.vector_store %arg21[%c0_71, %c0_72], %169 {strides = array<i32>} : memref<8x32xf32, #tpu.memory_space<vmem>>, vector<8x32xf32>,
    %c1_i32 = arith.constant 1 : i32
    %171 = arith.cmpi eq, %arg1, %c1_i32 : i32
    %172 = arith.extui %171 : i1 to i32
    %c0_i32_73 = arith.constant 0 : i32
    %173 = arith.cmpi ne, %172, %c0_i32_73 : i32
    scf.if %173 {
      %174 = arith.index_cast %arg0 : i32 to index
      %175 = memref.load %arg2[%174] : memref<2xi32, #tpu.memory_space<smem>>
      %176 = tpu.iota {dimensions = array<i32: 1>} : vector<1x8xi32>
      %177 = vector.broadcast %175 : i32 to vector<1x8xi32>
      %178 = arith.cmpi eq, %176, %177 : vector<1x8xi32>
      %179 = arith.extui %178 : vector<1x8xi1> to vector<1x8xi32>
      %180 = arith.sitofp %179 : vector<1x8xi32> to vector<1x8xf32>
      %cst_74 = arith.constant dense<0.000000e+00> : vector<1x32xf32>
      %181 = tpu.matmul %180, %169, %cst_74 {dimension_numbers = #tpu.dot_dimension_numbers<[1], [0], [0], [1], [0, 0, 1, 1], [], []>} : vector<1x8xf32>, vector<8x32xf32>, vector<1x32xf32> -> vector<1x32xf32>
      %c0_75 = arith.constant 0 : index
      %c0_76 = arith.constant 0 : index
      %182 = vector.load %arg17[%c0_75, %c0_76] : memref<1x32xf32, #tpu.memory_space<vmem>>, vector<1x32xf32>
      %c0_77 = arith.constant 0 : index
      %c0_78 = arith.constant 0 : index
      %183 = vector.load %arg18[%c0_77, %c0_78] : memref<1x32xf32, #tpu.memory_space<vmem>>, vector<1x32xf32>
      %cst_79 = arith.constant dense<0.000000e+00> : vector<1xf32>
      %184 = vector.multi_reduction <add>, %181, %cst_79 [1] : vector<1x32xf32> to vector<1xf32>
      %185 = vector.shape_cast %184 : vector<1xf32> to vector<1x1xf32>
      %cst_80 = arith.constant 3.200000e+01 : f32
      %186 = vector.broadcast %cst_80 : f32 to vector<1x1xf32>
      %187 = arith.divf %185, %186 : vector<1x1xf32>
      %188 = vector.broadcast %187 : vector<1x1xf32> to vector<1x32xf32>
      %189 = arith.subf %181, %188 : vector<1x32xf32>
      %190 = arith.mulf %189, %189 : vector<1x32xf32>
      %cst_81 = arith.constant dense<0.000000e+00> : vector<1xf32>
      %191 = vector.multi_reduction <add>, %190, %cst_81 [1] : vector<1x32xf32> to vector<1xf32>
      %192 = vector.shape_cast %191 : vector<1xf32> to vector<1x1xf32>
      %cst_82 = arith.constant 3.200000e+01 : f32
      %193 = vector.broadcast %cst_82 : f32 to vector<1x1xf32>
      %194 = arith.divf %192, %193 : vector<1x1xf32>
      %cst_83 = arith.constant 9.99999974E-6 : f32
      %195 = vector.broadcast %cst_83 : f32 to vector<1x1xf32>
      %196 = arith.addf %194, %195 : vector<1x1xf32>
      %197 = math.rsqrt %196 : vector<1x1xf32>
      %198 = vector.broadcast %197 : vector<1x1xf32> to vector<1x32xf32>
      %199 = arith.mulf %189, %198 : vector<1x32xf32>
      %200 = arith.mulf %199, %182 : vector<1x32xf32>
      %201 = arith.addf %200, %183 : vector<1x32xf32>
      %202 = arith.truncf %201 : vector<1x32xf32> to vector<1x32xbf16>
      %c0_84 = arith.constant 0 : index
      %c0_85 = arith.constant 0 : index
      %203 = vector.load %arg19[%c0_84, %c0_85] : memref<32x16xbf16, #tpu.memory_space<vmem>>, vector<32x16xbf16>
      %cst_86 = arith.constant dense<0.000000e+00> : vector<1x16xf32>
      %204 = tpu.matmul %202, %203, %cst_86 {dimension_numbers = #tpu.dot_dimension_numbers<[1], [0], [0], [1], [0, 0, 1, 1], [], []>} : vector<1x32xbf16>, vector<32x16xbf16>, vector<1x16xf32> -> vector<1x16xf32>
      %c0_87 = arith.constant 0 : index
      %c0_88 = arith.constant 0 : index
      %c0_89 = arith.constant 0 : index
      %205 = vector.load %arg20[%c0_87, %c0_88, %c0_89] : memref<1x1x16xf32, #tpu.memory_space<vmem>>, vector<1x1x16xf32>
      %206 = vector.shape_cast %205 : vector<1x1x16xf32> to vector<1x16xf32>
      %207 = vector.shape_cast %204 : vector<1x16xf32> to vector<1x1x16xf32>
      tpu.vector_store %arg20[%c0_87, %c0_88, %c0_89], %207 {strides = array<i32>} : memref<1x1x16xf32, #tpu.memory_space<vmem>>, vector<1x1x16xf32>,
    } else {
    }
    return
  }
  func.func @transform_0(%arg0: i32, %arg1: i32, %arg2: memref<2xi32, #tpu.memory_space<smem>>) -> (i32, i32, i32) {
    %c0_i32 = arith.constant 0 : i32
    %c0_i32_0 = arith.constant 0 : i32
    %c0_i32_1 = arith.constant 0 : i32
    return %arg0, %c0_i32, %c0_i32_0 : i32, i32, i32
  }
  func.func @transform_1(%arg0: i32, %arg1: i32, %arg2: memref<2xi32, #tpu.memory_space<smem>>) -> (i32, i32) {
    %c0_i32 = arith.constant 0 : i32
    %c0_i32_0 = arith.constant 0 : i32
    %c0_i32_1 = arith.constant 0 : i32
    return %c0_i32, %c0_i32_0 : i32, i32
  }
  func.func @transform_2(%arg0: i32, %arg1: i32, %arg2: memref<2xi32, #tpu.memory_space<smem>>) -> (i32, i32, i32) {
    %c0_i32 = arith.constant 0 : i32
    %c0_i32_0 = arith.constant 0 : i32
    %c0_i32_1 = arith.constant 0 : i32
    return %arg1, %c0_i32, %c0_i32_0 : i32, i32, i32
  }
  func.func @transform_3(%arg0: i32, %arg1: i32, %arg2: memref<2xi32, #tpu.memory_space<smem>>) -> (i32, i32, i32) {
    %c0_i32 = arith.constant 0 : i32
    %c0_i32_0 = arith.constant 0 : i32
    %c0_i32_1 = arith.constant 0 : i32
    return %arg1, %c0_i32, %c0_i32_0 : i32, i32, i32
  }
  func.func @transform_4(%arg0: i32, %arg1: i32, %arg2: memref<2xi32, #tpu.memory_space<smem>>) -> (i32, i32, i32) {
    %c0_i32 = arith.constant 0 : i32
    %c0_i32_0 = arith.constant 0 : i32
    %c0_i32_1 = arith.constant 0 : i32
    return %arg1, %c0_i32, %c0_i32_0 : i32, i32, i32
  }
  func.func @transform_5(%arg0: i32, %arg1: i32, %arg2: memref<2xi32, #tpu.memory_space<smem>>) -> (i32, i32, i32) {
    %c0_i32 = arith.constant 0 : i32
    %c0_i32_0 = arith.constant 0 : i32
    %c0_i32_1 = arith.constant 0 : i32
    return %arg1, %c0_i32, %c0_i32_0 : i32, i32, i32
  }
  func.func @transform_6(%arg0: i32, %arg1: i32, %arg2: memref<2xi32, #tpu.memory_space<smem>>) -> (i32, i32, i32) {
    %c0_i32 = arith.constant 0 : i32
    %c0_i32_0 = arith.constant 0 : i32
    %c0_i32_1 = arith.constant 0 : i32
    return %arg1, %c0_i32, %c0_i32_0 : i32, i32, i32
  }
  func.func @transform_7(%arg0: i32, %arg1: i32, %arg2: memref<2xi32, #tpu.memory_space<smem>>) -> (i32, i32, i32) {
    %c0_i32 = arith.constant 0 : i32
    %c0_i32_0 = arith.constant 0 : i32
    %c0_i32_1 = arith.constant 0 : i32
    return %arg1, %c0_i32, %c0_i32_0 : i32, i32, i32
  }
  func.func @transform_8(%arg0: i32, %arg1: i32, %arg2: memref<2xi32, #tpu.memory_space<smem>>) -> (i32, i32, i32) {
    %c0_i32 = arith.constant 0 : i32
    %c0_i32_0 = arith.constant 0 : i32
    %c0_i32_1 = arith.constant 0 : i32
    return %arg1, %c0_i32, %c0_i32_0 : i32, i32, i32
  }
  func.func @transform_9(%arg0: i32, %arg1: i32, %arg2: memref<2xi32, #tpu.memory_space<smem>>) -> (i32, i32, i32) {
    %c0_i32 = arith.constant 0 : i32
    %c0_i32_0 = arith.constant 0 : i32
    %c0_i32_1 = arith.constant 0 : i32
    return %arg1, %c0_i32, %c0_i32_0 : i32, i32, i32
  }
  func.func @transform_10(%arg0: i32, %arg1: i32, %arg2: memref<2xi32, #tpu.memory_space<smem>>) -> (i32, i32, i32) {
    %c0_i32 = arith.constant 0 : i32
    %c0_i32_0 = arith.constant 0 : i32
    %c0_i32_1 = arith.constant 0 : i32
    return %arg1, %c0_i32, %c0_i32_0 : i32, i32, i32
  }
  func.func @transform_11(%arg0: i32, %arg1: i32, %arg2: memref<2xi32, #tpu.memory_space<smem>>) -> (i32, i32, i32) {
    %c0_i32 = arith.constant 0 : i32
    %c0_i32_0 = arith.constant 0 : i32
    %c0_i32_1 = arith.constant 0 : i32
    return %arg1, %c0_i32, %c0_i32_0 : i32, i32, i32
  }
  func.func @transform_12(%arg0: i32, %arg1: i32, %arg2: memref<2xi32, #tpu.memory_space<smem>>) -> (i32, i32, i32) {
    %c0_i32 = arith.constant 0 : i32
    %c0_i32_0 = arith.constant 0 : i32
    %c0_i32_1 = arith.constant 0 : i32
    return %arg1, %c0_i32, %c0_i32_0 : i32, i32, i32
  }
  func.func @transform_13(%arg0: i32, %arg1: i32, %arg2: memref<2xi32, #tpu.memory_space<smem>>) -> (i32, i32, i32) {
    %c0_i32 = arith.constant 0 : i32
    %c0_i32_0 = arith.constant 0 : i32
    %c0_i32_1 = arith.constant 0 : i32
    return %arg1, %c0_i32, %c0_i32_0 : i32, i32, i32
  }
  func.func @transform_14(%arg0: i32, %arg1: i32, %arg2: memref<2xi32, #tpu.memory_space<smem>>) -> (i32, i32) {
    %c0_i32 = arith.constant 0 : i32
    %c0_i32_0 = arith.constant 0 : i32
    %c0_i32_1 = arith.constant 0 : i32
    return %c0_i32, %c0_i32_0 : i32, i32
  }
  func.func @transform_15(%arg0: i32, %arg1: i32, %arg2: memref<2xi32, #tpu.memory_space<smem>>) -> (i32, i32) {
    %c0_i32 = arith.constant 0 : i32
    %c0_i32_0 = arith.constant 0 : i32
    %c0_i32_1 = arith.constant 0 : i32
    return %c0_i32, %c0_i32_0 : i32, i32
  }
  func.func @transform_16(%arg0: i32, %arg1: i32, %arg2: memref<2xi32, #tpu.memory_space<smem>>) -> (i32, i32) {
    %c0_i32 = arith.constant 0 : i32
    %c0_i32_0 = arith.constant 0 : i32
    %c0_i32_1 = arith.constant 0 : i32
    return %c0_i32, %c0_i32_0 : i32, i32
  }
  func.func @transform_17(%arg0: i32, %arg1: i32, %arg2: memref<2xi32, #tpu.memory_space<smem>>) -> (i32, i32, i32) {
    %c0_i32 = arith.constant 0 : i32
    %c0_i32_0 = arith.constant 0 : i32
    %c0_i32_1 = arith.constant 0 : i32
    return %arg0, %c0_i32, %c0_i32_0 : i32, i32, i32
  }
}

</mosaic_0001>

<llo_original>
// kernel: text_encoder.1
$region0: #{text_encoder.1}
  #allocation0 [shape = 'u32[]', space=smem, size = 0x4, offset = 0x4, fixed_abs, tag = 'smem constant byte address 0x4 - core index']
  #allocation1 [shape = 'u32[144,128]{1,0:T(1,128)}', space=vmem, size = 0x12000, scoped, tag = 'internal scratch']
  #allocation2 [shape = 'f32[8,32]{1,0:T(8,128)}', space=vmem, size = 0x1000, scoped, tag = 'scratch operand']
  #allocation3 [shape = 's32[1]{0}', space=sflag, size = 0x4, scoped, tag = 'scoped memory for text_encoder.1']
  #allocation4 [shape = 'u8[512]{0}', space=smem, size = 0x200, scoped, tag = 'prefetched SMEM operand 0']
  %s0 = inlined_call_operand.vmem [shape: s32[2], index: 0, kind: input, shape index: {}]
  %s1 = inlined_call_operand.vmem [shape: f32[2,8,32], index: 1, kind: input, shape index: {}]
  %s2 = inlined_call_operand.vmem [shape: f32[8,32], index: 2, kind: input, shape index: {}]
  %s3 = inlined_call_operand.vmem [shape: f32[2,1,32], index: 3, kind: input, shape index: {}]
  %s4 = inlined_call_operand.vmem [shape: f32[2,1,32], index: 4, kind: input, shape index: {}]
  %s5 = inlined_call_operand.vmem [shape: bf16[2,32,96], index: 5, kind: input, shape index: {}]
  %s6 = inlined_call_operand.vmem [shape: f32[2,1,96], index: 6, kind: input, shape index: {}]
  %s7 = inlined_call_operand.vmem [shape: bf16[2,32,32], index: 7, kind: input, shape index: {}]
  %s8 = inlined_call_operand.vmem [shape: f32[2,1,32], index: 8, kind: input, shape index: {}]
  %s9 = inlined_call_operand.vmem [shape: f32[2,1,32], index: 9, kind: input, shape index: {}]
  %s10 = inlined_call_operand.vmem [shape: f32[2,1,32], index: 10, kind: input, shape index: {}]
  %s11 = inlined_call_operand.vmem [shape: bf16[2,32,128], index: 11, kind: input, shape index: {}]
  %s12 = inlined_call_operand.vmem [shape: f32[2,1,128], index: 12, kind: input, shape index: {}]
  %s13 = inlined_call_operand.vmem [shape: bf16[2,128,32], index: 13, kind: input, shape index: {}]
  %s14 = inlined_call_operand.vmem [shape: f32[2,1,32], index: 14, kind: input, shape index: {}]
  %s15 = inlined_call_operand.vmem [shape: f32[1,32], index: 15, kind: input, shape index: {}]
  %s16 = inlined_call_operand.vmem [shape: f32[1,32], index: 16, kind: input, shape index: {}]
  %s17 = inlined_call_operand.vmem [shape: bf16[32,16], index: 17, kind: input, shape index: {}]
  %s18 = inlined_call_operand.hbm [shape: f32[2,1,16], index: 18, kind: output, shape index: {}]
  %s19 = sld [smem:[#allocation0]]
  $region109: #{text_encoder.1} parent=0
    _
  %s21 = ssub.s32 1, %s19
  %s22 = scalar_select 0, %s21, %s19
  %s23 = sshll.u32 %s0, 4
  %s24 = int_to_ptr.vmem [resolvable:$true] %s23
  %26 = dma.vmem_to_smem %s24, 16, [#allocation4], [#allocation3]
  %27 = dma.done [#allocation3], 16
  %28 = sfence
  $region1: #{text_encoder.1} parent=0
    #allocation5 [shape = 'u8[1024]{0}', space=vmem, size = 0x400, scoped, tag = 'output window, operand 0']
    #allocation6 [shape = 's32[2]{0}', space=sflag, size = 0x8, scoped, tag = 'scoped memory for text_encoder.1']
    %29 = vsyncpa [#allocation6], 0
    %s30 = scalar_lea.sflag [#allocation6], 1
    %31 = vsyncpa %s30, 0
    loop: start=0, step=1, limit=6
    $region2: #{text_encoder.1} parent=1 // loop_pre_header
      _
    $region3: #{text_encoder.1} parent=1 // loop_header
      %s33 = sphi 0, %s37
      %p34 = scmp.ge.s32.totalorder %s33, 6
      %s40 = sphi 0, %s52
      %s41 = sphi 0, %s48
      %s42 = sphi 0, %s40
      %s43 = sphi 0, %s41
      %s44 = sphi 0, %s42
      %s45 = sphi 0, %s43
      %s55 = sphi 0, %s57
      %s58 = sphi 0, %s55
      %s59 = sphi 0, %s58
      %s75 = sphi 0, %s59
      %s79 = sphi 0, %s79
      %s81 = sphi 0, %s79
      %s82 = sphi 0, %s81
      %s96 = sphi 0, %s82
      %s102 = sphi 0, %s104
      %s105 = sphi 0, %s102
      %s106 = sphi 0, %s105
      %s122 = sphi 0, %s106
      %s128 = sphi 0, %s130
      %s131 = sphi 0, %s128
      %s132 = sphi 0, %s131
      %s148 = sphi 0, %s132
      %s154 = sphi 0, %s156
      %s157 = sphi 0, %s154
      %s158 = sphi 0, %s157
      %s174 = sphi 0, %s158
      %s180 = sphi 0, %s182
      %s183 = sphi 0, %s180
      %s184 = sphi 0, %s183
      %s200 = sphi 0, %s184
      %s206 = sphi 0, %s208
      %s209 = sphi 0, %s206
      %s210 = sphi 0, %s209
      %s226 = sphi 0, %s210
      %s232 = sphi 0, %s234
      %s235 = sphi 0, %s232
      %s236 = sphi 0, %s235
      %s252 = sphi 0, %s236
      %s258 = sphi 0, %s260
      %s261 = sphi 0, %s258
      %s262 = sphi 0, %s261
      %s278 = sphi 0, %s262
      %s284 = sphi 0, %s286
      %s287 = sphi 0, %s284
      %s288 = sphi 0, %s287
      %s304 = sphi 0, %s288
      %s310 = sphi 0, %s312
      %s313 = sphi 0, %s310
      %s314 = sphi 0, %s313
      %s330 = sphi 0, %s314
      %s336 = sphi 0, %s338
      %s339 = sphi 0, %s336
      %s340 = sphi 0, %s339
      %s356 = sphi 0, %s340
      %s362 = sphi 0, %s364
      %s365 = sphi 0, %s362
      %s366 = sphi 0, %s365
      %s382 = sphi 0, %s366
      %s388 = sphi 0, %s390
      %s391 = sphi 0, %s388
      %s392 = sphi 0, %s391
      %s408 = sphi 0, %s392
      %s412 = sphi 0, %s412
      %s414 = sphi 0, %s412
      %s415 = sphi 0, %s414
      %s429 = sphi 0, %s415
      %s433 = sphi 0, %s433
      %s435 = sphi 0, %s433
      %s436 = sphi 0, %s435
      %s450 = sphi 0, %s436
      %s454 = sphi 0, %s454
      %s456 = sphi 0, %s454
      %s457 = sphi 0, %s456
      %s471 = sphi 0, %s457
      %s477 = sphi 0, %s479
      %s480 = sphi 0, %s477
      %s481 = sphi 0, %s480
      %s497 = sphi 0, %s481
    $region4: #{text_encoder.1} parent=1 // loop_header_branch
      %36 = sbr.rel (%p34) target = $region8
    $region5: #{text_encoder.1} parent=1 // loop_body
      %s38 = ssub.s32 %s33, 1
      %s39 = ssub.s32 %s33, 2
      %s46 = sadd.s32 1, %s41
      %p47 = scmp.ge.s32.totalorder %s46, 2
      %s48 = scalar_select %p47, 0, %s46
      %s49 = sadd.s32 1, %s40
      %s50 = scalar_select %p47, %s49, %s40
      %p51 = scmp.ge.s32.totalorder %s50, 2
      %s52 = scalar_select %p51, 0, %s50
      %s53 = ssub.s32 %s40, %s52
      %p54 = scmp.eq.s32.totalorder %s53, 0
      %s56 = sadd.s32 %s55, 1
      %s57 = scalar_select %p54, %s55, %s56
      %p60 = pneg %p54
      %p61 = scmp.eq.s32.totalorder %s33, 3
      %p62 = por %p60, %p61
      %p63 = scmp.ne.s32.totalorder %s55, %s58
      %p64 = scmp.eq.s32.totalorder %s33, 0
      %p65 = por %p63, %p64
      %p66 = scmp.ne.s32.totalorder %s55, %s58
      %p67 = scmp.eq.s32.totalorder %s38, 3
      %p68 = por %p66, %p67
      %p69 = scmp.ne.s32.totalorder %s58, %s59
      %p70 = scmp.eq.s32.totalorder %s38, 0
      %p71 = por %p69, %p70
      %p72 = scmp.ne.s32.totalorder %s58, %s59
      %p73 = scmp.eq.s32.totalorder %s39, 3
      %p74 = por %p72, %p73
      %p76 = scmp.ne.s32.totalorder %s59, %s75
      %p77 = scmp.eq.s32.totalorder %s39, 0
      %p78 = por %p76, %p77
      %s80 = sadd.s32 %s79, 1
      %p83 = scmp.eq.s32.totalorder %s33, 3
      %p84 = scmp.ne.s32.totalorder %s79, %s81
      %p85 = scmp.eq.s32.totalorder %s33, 0
      %p86 = por %p84, %p85
      %p87 = scmp.ne.s32.totalorder %s79, %s81
      %p88 = scmp.eq.s32.totalorder %s38, 3
      %p89 = por %p87, %p88
      %p90 = scmp.ne.s32.totalorder %s81, %s82
      %p91 = scmp.eq.s32.totalorder %s38, 0
      %p92 = por %p90, %p91
      %p93 = scmp.ne.s32.totalorder %s81, %s82
      %p94 = scmp.eq.s32.totalorder %s39, 3
      %p95 = por %p93, %p94
      %p97 = scmp.ne.s32.totalorder %s82, %s96
      %p98 = scmp.eq.s32.totalorder %s39, 0
      %p99 = por %p97, %p98
      %s100 = ssub.s32 %s41, %s48
      %p101 = scmp.eq.s32.totalorder %s100, 0
      %s103 = sadd.s32 %s102, 1
      %s104 = scalar_select %p101, %s102, %s103
      %p107 = pneg %p101
      %p108 = scmp.eq.s32.totalorder %s33, 3
      %p109 = por %p107, %p108
      %p110 = scmp.ne.s32.totalorder %s102, %s105
      %p111 = scmp.eq.s32.totalorder %s33, 0
      %p112 = por %p110, %p111
      %p113 = scmp.ne.s32.totalorder %s102, %s105
      %p114 = scmp.eq.s32.totalorder %s38, 3
      %p115 = por %p113, %p114
      %p116 = scmp.ne.s32.totalorder %s105, %s106
      %p117 = scmp.eq.s32.totalorder %s38, 0
      %p118 = por %p116, %p117
      %p119 = scmp.ne.s32.totalorder %s105, %s106
      %p120 = scmp.eq.s32.totalorder %s39, 3
      %p121 = por %p119, %p120
      %p123 = scmp.ne.s32.totalorder %s106, %s122
      %p124 = scmp.eq.s32.totalorder %s39, 0
      %p125 = por %p123, %p124
      %s126 = ssub.s32 %s41, %s48
      %p127 = scmp.eq.s32.totalorder %s126, 0
      %s129 = sadd.s32 %s128, 1
      %s130 = scalar_select %p127, %s128, %s129
      %p133 = pneg %p127
      %p134 = scmp.eq.s32.totalorder %s33, 3
      %p135 = por %p133, %p134
      %p136 = scmp.ne.s32.totalorder %s128, %s131
      %p137 = scmp.eq.s32.totalorder %s33, 0
      %p138 = por %p136, %p137
      %p139 = scmp.ne.s32.totalorder %s128, %s131
      %p140 = scmp.eq.s32.totalorder %s38, 3
      %p141 = por %p139, %p140
      %p142 = scmp.ne.s32.totalorder %s131, %s132
      %p143 = scmp.eq.s32.totalorder %s38, 0
      %p144 = por %p142, %p143
      %p145 = scmp.ne.s32.totalorder %s131, %s132
      %p146 = scmp.eq.s32.totalorder %s39, 3
      %p147 = por %p145, %p146
      %p149 = scmp.ne.s32.totalorder %s132, %s148
      %p150 = scmp.eq.s32.totalorder %s39, 0
      %p151 = por %p149, %p150
      %s152 = ssub.s32 %s41, %s48
      %p153 = scmp.eq.s32.totalorder %s152, 0
      %s155 = sadd.s32 %s154, 1
      %s156 = scalar_select %p153, %s154, %s155
      %p159 = pneg %p153
      %p160 = scmp.eq.s32.totalorder %s33, 3
      %p161 = por %p159, %p160
      %p162 = scmp.ne.s32.totalorder %s154, %s157
      %p163 = scmp.eq.s32.totalorder %s33, 0
      %p164 = por %p162, %p163
      %p165 = scmp.ne.s32.totalorder %s154, %s157
      %p166 = scmp.eq.s32.totalorder %s38, 3
      %p167 = por %p165, %p166
      %p168 = scmp.ne.s32.totalorder %s157, %s158
      %p169 = scmp.eq.s32.totalorder %s38, 0
      %p170 = por %p168, %p169
      %p171 = scmp.ne.s32.totalorder %s157, %s158
      %p172 = scmp.eq.s32.totalorder %s39, 3
      %p173 = por %p171, %p172
      %p175 = scmp.ne.s32.totalorder %s158, %s174
      %p176 = scmp.eq.s32.totalorder %s39, 0
      %p177 = por %p175, %p176
      %s178 = ssub.s32 %s41, %s48
      %p179 = scmp.eq.s32.totalorder %s178, 0
      %s181 = sadd.s32 %s180, 1
      %s182 = scalar_select %p179, %s180, %s181
      %p185 = pneg %p179
      %p186 = scmp.eq.s32.totalorder %s33, 3
      %p187 = por %p185, %p186
      %p188 = scmp.ne.s32.totalorder %s180, %s183
      %p189 = scmp.eq.s32.totalorder %s33, 0
      %p190 = por %p188, %p189
      %p191 = scmp.ne.s32.totalorder %s180, %s183
      %p192 = scmp.eq.s32.totalorder %s38, 3
      %p193 = por %p191, %p192
      %p194 = scmp.ne.s32.totalorder %s183, %s184
      %p195 = scmp.eq.s32.totalorder %s38, 0
      %p196 = por %p194, %p195
      %p197 = scmp.ne.s32.totalorder %s183, %s184
      %p198 = scmp.eq.s32.totalorder %s39, 3
      %p199 = por %p197, %p198
      %p201 = scmp.ne.s32.totalorder %s184, %s200
      %p202 = scmp.eq.s32.totalorder %s39, 0
      %p203 = por %p201, %p202
      %s204 = ssub.s32 %s41, %s48
      %p205 = scmp.eq.s32.totalorder %s204, 0
      %s207 = sadd.s32 %s206, 1
      %s208 = scalar_select %p205, %s206, %s207
      %p211 = pneg %p205
      %p212 = scmp.eq.s32.totalorder %s33, 3
      %p213 = por %p211, %p212
      %p214 = scmp.ne.s32.totalorder %s206, %s209
      %p215 = scmp.eq.s32.totalorder %s33, 0
      %p216 = por %p214, %p215
      %p217 = scmp.ne.s32.totalorder %s206, %s209
      %p218 = scmp.eq.s32.totalorder %s38, 3
      %p219 = por %p217, %p218
      %p220 = scmp.ne.s32.totalorder %s209, %s210
      %p221 = scmp.eq.s32.totalorder %s38, 0
      %p222 = por %p220, %p221
      %p223 = scmp.ne.s32.totalorder %s209, %s210
      %p224 = scmp.eq.s32.totalorder %s39, 3
      %p225 = por %p223, %p224
      %p227 = scmp.ne.s32.totalorder %s210, %s226
      %p228 = scmp.eq.s32.totalorder %s39, 0
      %p229 = por %p227, %p228
      %s230 = ssub.s32 %s41, %s48
      %p231 = scmp.eq.s32.totalorder %s230, 0
      %s233 = sadd.s32 %s232, 1
      %s234 = scalar_select %p231, %s232, %s233
      %p237 = pneg %p231
      %p238 = scmp.eq.s32.totalorder %s33, 3
      %p239 = por %p237, %p238
      %p240 = scmp.ne.s32.totalorder %s232, %s235
      %p241 = scmp.eq.s32.totalorder %s33, 0
      %p242 = por %p240, %p241
      %p243 = scmp.ne.s32.totalorder %s232, %s235
      %p244 = scmp.eq.s32.totalorder %s38, 3
      %p245 = por %p243, %p244
      %p246 = scmp.ne.s32.totalorder %s235, %s236
      %p247 = scmp.eq.s32.totalorder %s38, 0
      %p248 = por %p246, %p247
      %p249 = scmp.ne.s32.totalorder %s235, %s236
      %p250 = scmp.eq.s32.totalorder %s39, 3
      %p251 = por %p249, %p250
      %p253 = scmp.ne.s32.totalorder %s236, %s252
      %p254 = scmp.eq.s32.totalorder %s39, 0
      %p255 = por %p253, %p254
      %s256 = ssub.s32 %s41, %s48
      %p257 = scmp.eq.s32.totalorder %s256, 0
      %s259 = sadd.s32 %s258, 1
      %s260 = scalar_select %p257, %s258, %s259
      %p263 = pneg %p257
      %p264 = scmp.eq.s32.totalorder %s33, 3
      %p265 = por %p263, %p264
      %p266 = scmp.ne.s32.totalorder %s258, %s261
      %p267 = scmp.eq.s32.totalorder %s33, 0
      %p268 = por %p266, %p267
      %p269 = scmp.ne.s32.totalorder %s258, %s261
      %p270 = scmp.eq.s32.totalorder %s38, 3
      %p271 = por %p269, %p270
      %p272 = scmp.ne.s32.totalorder %s261, %s262
      %p273 = scmp.eq.s32.totalorder %s38, 0
      %p274 = por %p272, %p273
      %p275 = scmp.ne.s32.totalorder %s261, %s262
      %p276 = scmp.eq.s32.totalorder %s39, 3
      %p277 = por %p275, %p276
      %p279 = scmp.ne.s32.totalorder %s262, %s278
      %p280 = scmp.eq.s32.totalorder %s39, 0
      %p281 = por %p279, %p280
      %s282 = ssub.s32 %s41, %s48
      %p283 = scmp.eq.s32.totalorder %s282, 0
      %s285 = sadd.s32 %s284, 1
      %s286 = scalar_select %p283, %s284, %s285
      %p289 = pneg %p283
      %p290 = scmp.eq.s32.totalorder %s33, 3
      %p291 = por %p289, %p290
      %p292 = scmp.ne.s32.totalorder %s284, %s287
      %p293 = scmp.eq.s32.totalorder %s33, 0
      %p294 = por %p292, %p293
      %p295 = scmp.ne.s32.totalorder %s284, %s287
      %p296 = scmp.eq.s32.totalorder %s38, 3
      %p297 = por %p295, %p296
      %p298 = scmp.ne.s32.totalorder %s287, %s288
      %p299 = scmp.eq.s32.totalorder %s38, 0
      %p300 = por %p298, %p299
      %p301 = scmp.ne.s32.totalorder %s287, %s288
      %p302 = scmp.eq.s32.totalorder %s39, 3
      %p303 = por %p301, %p302
      %p305 = scmp.ne.s32.totalorder %s288, %s304
      %p306 = scmp.eq.s32.totalorder %s39, 0
      %p307 = por %p305, %p306
      %s308 = ssub.s32 %s41, %s48
      %p309 = scmp.eq.s32.totalorder %s308, 0
      %s311 = sadd.s32 %s310, 1
      %s312 = scalar_select %p309, %s310, %s311
      %p315 = pneg %p309
      %p316 = scmp.eq.s32.totalorder %s33, 3
      %p317 = por %p315, %p316
      %p318 = scmp.ne.s32.totalorder %s310, %s313
      %p319 = scmp.eq.s32.totalorder %s33, 0
      %p320 = por %p318, %p319
      %p321 = scmp.ne.s32.totalorder %s310, %s313
      %p322 = scmp.eq.s32.totalorder %s38, 3
      %p323 = por %p321, %p322
      %p324 = scmp.ne.s32.totalorder %s313, %s314
      %p325 = scmp.eq.s32.totalorder %s38, 0
      %p326 = por %p324, %p325
      %p327 = scmp.ne.s32.totalorder %s313, %s314
      %p328 = scmp.eq.s32.totalorder %s39, 3
      %p329 = por %p327, %p328
      %p331 = scmp.ne.s32.totalorder %s314, %s330
      %p332 = scmp.eq.s32.totalorder %s39, 0
      %p333 = por %p331, %p332
      %s334 = ssub.s32 %s41, %s48
      %p335 = scmp.eq.s32.totalorder %s334, 0
      %s337 = sadd.s32 %s336, 1
      %s338 = scalar_select %p335, %s336, %s337
      %p341 = pneg %p335
      %p342 = scmp.eq.s32.totalorder %s33, 3
      %p343 = por %p341, %p342
      %p344 = scmp.ne.s32.totalorder %s336, %s339
      %p345 = scmp.eq.s32.totalorder %s33, 0
      %p346 = por %p344, %p345
      %p347 = scmp.ne.s32.totalorder %s336, %s339
      %p348 = scmp.eq.s32.totalorder %s38, 3
      %p349 = por %p347, %p348
      %p350 = scmp.ne.s32.totalorder %s339, %s340
      %p351 = scmp.eq.s32.totalorder %s38, 0
      %p352 = por %p350, %p351
      %p353 = scmp.ne.s32.totalorder %s339, %s340
      %p354 = scmp.eq.s32.totalorder %s39, 3
      %p355 = por %p353, %p354
      %p357 = scmp.ne.s32.totalorder %s340, %s356
      %p358 = scmp.eq.s32.totalorder %s39, 0
      %p359 = por %p357, %p358
      %s360 = ssub.s32 %s41, %s48
      %p361 = scmp.eq.s32.totalorder %s360, 0
      %s363 = sadd.s32 %s362, 1
      %s364 = scalar_select %p361, %s362, %s363
      %p367 = pneg %p361
      %p368 = scmp.eq.s32.totalorder %s33, 3
      %p369 = por %p367, %p368
      %p370 = scmp.ne.s32.totalorder %s362, %s365
      %p371 = scmp.eq.s32.totalorder %s33, 0
      %p372 = por %p370, %p371
      %p373 = scmp.ne.s32.totalorder %s362, %s365
      %p374 = scmp.eq.s32.totalorder %s38, 3
      %p375 = por %p373, %p374
      %p376 = scmp.ne.s32.totalorder %s365, %s366
      %p377 = scmp.eq.s32.totalorder %s38, 0
      %p378 = por %p376, %p377
      %p379 = scmp.ne.s32.totalorder %s365, %s366
      %p380 = scmp.eq.s32.totalorder %s39, 3
      %p381 = por %p379, %p380
      %p383 = scmp.ne.s32.totalorder %s366, %s382
      %p384 = scmp.eq.s32.totalorder %s39, 0
      %p385 = por %p383, %p384
      %s386 = ssub.s32 %s41, %s48
      %p387 = scmp.eq.s32.totalorder %s386, 0
      %s389 = sadd.s32 %s388, 1
      %s390 = scalar_select %p387, %s388, %s389
      %p393 = pneg %p387
      %p394 = scmp.eq.s32.totalorder %s33, 3
      %p395 = por %p393, %p394
      %p396 = scmp.ne.s32.totalorder %s388, %s391
      %p397 = scmp.eq.s32.totalorder %s33, 0
      %p398 = por %p396, %p397
      %p399 = scmp.ne.s32.totalorder %s388, %s391
      %p400 = scmp.eq.s32.totalorder %s38, 3
      %p401 = por %p399, %p400
      %p402 = scmp.ne.s32.totalorder %s391, %s392
      %p403 = scmp.eq.s32.totalorder %s38, 0
      %p404 = por %p402, %p403
      %p405 = scmp.ne.s32.totalorder %s391, %s392
      %p406 = scmp.eq.s32.totalorder %s39, 3
      %p407 = por %p405, %p406
      %p409 = scmp.ne.s32.totalorder %s392, %s408
      %p410 = scmp.eq.s32.totalorder %s39, 0
      %p411 = por %p409, %p410
      %s413 = sadd.s32 %s412, 1
      %p416 = scmp.eq.s32.totalorder %s33, 3
      %p417 = scmp.ne.s32.totalorder %s412, %s414
      %p418 = scmp.eq.s32.totalorder %s33, 0
      %p419 = por %p417, %p418
      %p420 = scmp.ne.s32.totalorder %s412, %s414
      %p421 = scmp.eq.s32.totalorder %s38, 3
      %p422 = por %p420, %p421
      %p423 = scmp.ne.s32.totalorder %s414, %s415
      %p424 = scmp.eq.s32.totalorder %s38, 0
      %p425 = por %p423, %p424
      %p426 = scmp.ne.s32.totalorder %s414, %s415
      %p427 = scmp.eq.s32.totalorder %s39, 3
      %p428 = por %p426, %p427
      %p430 = scmp.ne.s32.totalorder %s415, %s429
      %p431 = scmp.eq.s32.totalorder %s39, 0
      %p432 = por %p430, %p431
      %s434 = sadd.s32 %s433, 1
      %p437 = scmp.eq.s32.totalorder %s33, 3
      %p438 = scmp.ne.s32.totalorder %s433, %s435
      %p439 = scmp.eq.s32.totalorder %s33, 0
      %p440 = por %p438, %p439
      %p441 = scmp.ne.s32.totalorder %s433, %s435
      %p442 = scmp.eq.s32.totalorder %s38, 3
      %p443 = por %p441, %p442
      %p444 = scmp.ne.s32.totalorder %s435, %s436
      %p445 = scmp.eq.s32.totalorder %s38, 0
      %p446 = por %p444, %p445
      %p447 = scmp.ne.s32.totalorder %s435, %s436
      %p448 = scmp.eq.s32.totalorder %s39, 3
      %p449 = por %p447, %p448
      %p451 = scmp.ne.s32.totalorder %s436, %s450
      %p452 = scmp.eq.s32.totalorder %s39, 0
      %p453 = por %p451, %p452
      %s455 = sadd.s32 %s454, 1
      %p458 = scmp.eq.s32.totalorder %s33, 3
      %p459 = scmp.ne.s32.totalorder %s454, %s456
      %p460 = scmp.eq.s32.totalorder %s33, 0
      %p461 = por %p459, %p460
      %p462 = scmp.ne.s32.totalorder %s454, %s456
      %p463 = scmp.eq.s32.totalorder %s38, 3
      %p464 = por %p462, %p463
      %p465 = scmp.ne.s32.totalorder %s456, %s457
      %p466 = scmp.eq.s32.totalorder %s38, 0
      %p467 = por %p465, %p466
      %p468 = scmp.ne.s32.totalorder %s456, %s457
      %p469 = scmp.eq.s32.totalorder %s39, 3
      %p470 = por %p468, %p469
      %p472 = scmp.ne.s32.totalorder %s457, %s471
      %p473 = scmp.eq.s32.totalorder %s39, 0
      %p474 = por %p472, %p473
      %s475 = ssub.s32 %s40, %s52
      %p476 = scmp.eq.s32.totalorder %s475, 0
      %s478 = sadd.s32 %s477, 1
      %s479 = scalar_select %p476, %s477, %s478
      %p482 = pneg %p476
      %p483 = scmp.eq.s32.totalorder %s33, 3
      %p484 = por %p482, %p483
      %p485 = scmp.ne.s32.totalorder %s477, %s480
      %p486 = scmp.eq.s32.totalorder %s33, 0
      %p487 = por %p485, %p486
      %p488 = scmp.ne.s32.totalorder %s477, %s480
      %p489 = scmp.eq.s32.totalorder %s38, 3
      %p490 = por %p488, %p489
      %p491 = scmp.ne.s32.totalorder %s480, %s481
      %p492 = scmp.eq.s32.totalorder %s38, 0
      %p493 = por %p491, %p492
      %p494 = scmp.ne.s32.totalorder %s480, %s481
      %p495 = scmp.eq.s32.totalorder %s39, 3
      %p496 = por %p494, %p495
      %p498 = scmp.ne.s32.totalorder %s481, %s497
      %p499 = scmp.eq.s32.totalorder %s39, 0
      %p500 = por %p498, %p499
      %p501 = scmp.le.s32.totalorder 1, %s33
      %p502 = scmp.lt.s32.totalorder %s33, 5
      %p503 = pnand %p501, %p502
      %p504 = pneg %p503
      // Predicated region
      $region9: #{text_encoder.1} parent=5 // pred_check
        _
      $region10: #{text_encoder.1} parent=5 // pred_check_branch
        %506 = sbr.rel (%p503) target = $region12
      $region11: #{text_encoder.1} parent=5 // pred_region
        %s507 = ssub.s32 %s33, 1
        // Predicated region
        $region13: #{text_encoder.1} parent=11 // pred_check
          %p508 = pneg %p92
        $region14: #{text_encoder.1} parent=11 // pred_check_branch
          %510 = sbr.rel (%p508) target = $region16
        $region15: #{text_encoder.1} parent=11 // pred_region
          _
        $region16: #{text_encoder.1} parent=11 // pred_fallthru
          _
        // Predicated region
        $region17: #{text_encoder.1} parent=11 // pred_check
          %p511 = pneg %p425
        $region18: #{text_encoder.1} parent=11 // pred_check_branch
          %513 = sbr.rel (%p511) target = $region20
        $region19: #{text_encoder.1} parent=11 // pred_region
          _
        $region20: #{text_encoder.1} parent=11 // pred_fallthru
          _
        // Predicated region
        $region21: #{text_encoder.1} parent=11 // pred_check
          %p514 = pneg %p446
        $region22: #{text_encoder.1} parent=11 // pred_check_branch
          %516 = sbr.rel (%p514) target = $region24
        $region23: #{text_encoder.1} parent=11 // pred_region
          _
        $region24: #{text_encoder.1} parent=11 // pred_fallthru
          _
        // Predicated region
        $region25: #{text_encoder.1} parent=11 // pred_check
          %p517 = pneg %p467
        $region26: #{text_encoder.1} parent=11 // pred_check_branch
          %519 = sbr.rel (%p517) target = $region28
        $region27: #{text_encoder.1} parent=11 // pred_region
          _
        $region28: #{text_encoder.1} parent=11 // pred_fallthru
          _
      $region12: #{text_encoder.1} parent=5 // pred_fallthru
        _
      %p520 = scmp.lt.s32.totalorder %s33, 4
      // Predicated region
      $region29: #{text_encoder.1} parent=5 // pred_check
        %p521 = pneg %p520
      $region30: #{text_encoder.1} parent=5 // pred_check_branch
        %523 = sbr.rel (%p521) target = $region32
      $region31: #{text_encoder.1} parent=5 // pred_region
        // Predicated region
        $region33: #{text_encoder.1} parent=31 // pred_check
          %p524 = pneg %p65
        $region34: #{text_encoder.1} parent=31 // pred_check_branch
          %526 = sbr.rel (%p524) target = $region36
        $region35: #{text_encoder.1} parent=31 // pred_region
          %p527 = scmp.lt.s32.totalorder %s40, 1
          %s528 = scalar_select %p527, %s40, 1
          %s529 = smul.addr %s528, 8
          %s530 = scalar_lea.vmem %s1, %s529
        $region36: #{text_encoder.1} parent=31 // pred_fallthru
          _
        // Predicated region
        $region37: #{text_encoder.1} parent=31 // pred_check
          %p531 = pneg %p112
        $region38: #{text_encoder.1} parent=31 // pred_check_branch
          %533 = sbr.rel (%p531) target = $region40
        $region39: #{text_encoder.1} parent=31 // pred_region
          %p534 = scmp.lt.s32.totalorder %s41, 1
          %s535 = scalar_select %p534, %s41, 1
          %s536 = scalar_lea.vmem %s3, %s535
        $region40: #{text_encoder.1} parent=31 // pred_fallthru
          _
        // Predicated region
        $region41: #{text_encoder.1} parent=31 // pred_check
          %p537 = pneg %p138
        $region42: #{text_encoder.1} parent=31 // pred_check_branch
          %539 = sbr.rel (%p537) target = $region44
        $region43: #{text_encoder.1} parent=31 // pred_region
          %p540 = scmp.lt.s32.totalorder %s41, 1
          %s541 = scalar_select %p540, %s41, 1
          %s542 = scalar_lea.vmem %s4, %s541
        $region44: #{text_encoder.1} parent=31 // pred_fallthru
          _
        // Predicated region
        $region45: #{text_encoder.1} parent=31 // pred_check
          %p543 = pneg %p164
        $region46: #{text_encoder.1} parent=31 // pred_check_branch
          %545 = sbr.rel (%p543) target = $region48
        $region47: #{text_encoder.1} parent=31 // pred_region
          %p546 = scmp.lt.s32.totalorder %s41, 1
          %s547 = scalar_select %p546, %s41, 1
          %s548 = smul.addr %s547, 4
          %s549 = smul.addr %s548, 4
          %s550 = scalar_lea.vmem %s5, %s549
        $region48: #{text_encoder.1} parent=31 // pred_fallthru
          _
        // Predicated region
        $region49: #{text_encoder.1} parent=31 // pred_check
          %p551 = pneg %p190
        $region50: #{text_encoder.1} parent=31 // pred_check_branch
          %553 = sbr.rel (%p551) target = $region52
        $region51: #{text_encoder.1} parent=31 // pred_region
          %p554 = scmp.lt.s32.totalorder %s41, 1
          %s555 = scalar_select %p554, %s41, 1
          %s556 = scalar_lea.vmem %s6, %s555
        $region52: #{text_encoder.1} parent=31 // pred_fallthru
          _
        // Predicated region
        $region53: #{text_encoder.1} parent=31 // pred_check
          %p557 = pneg %p216
        $region54: #{text_encoder.1} parent=31 // pred_check_branch
          %559 = sbr.rel (%p557) target = $region56
        $region55: #{text_encoder.1} parent=31 // pred_region
          %p560 = scmp.lt.s32.totalorder %s41, 1
          %s561 = scalar_select %p560, %s41, 1
          %s562 = smul.addr %s561, 4
          %s563 = smul.addr %s562, 4
          %s564 = scalar_lea.vmem %s7, %s563
        $region56: #{text_encoder.1} parent=31 // pred_fallthru
          _
        // Predicated region
        $region57: #{text_encoder.1} parent=31 // pred_check
          %p565 = pneg %p242
        $region58: #{text_encoder.1} parent=31 // pred_check_branch
          %567 = sbr.rel (%p565) target = $region60
        $region59: #{text_encoder.1} parent=31 // pred_region
          %p568 = scmp.lt.s32.totalorder %s41, 1
          %s569 = scalar_select %p568, %s41, 1
          %s570 = scalar_lea.vmem %s8, %s569
        $region60: #{text_encoder.1} parent=31 // pred_fallthru
          _
        // Predicated region
        $region61: #{text_encoder.1} parent=31 // pred_check
          %p571 = pneg %p268
        $region62: #{text_encoder.1} parent=31 // pred_check_branch
          %573 = sbr.rel (%p571) target = $region64
        $region63: #{text_encoder.1} parent=31 // pred_region
          %p574 = scmp.lt.s32.totalorder %s41, 1
          %s575 = scalar_select %p574, %s41, 1
          %s576 = scalar_lea.vmem %s9, %s575
        $region64: #{text_encoder.1} parent=31 // pred_fallthru
          _
        // Predicated region
        $region65: #{text_encoder.1} parent=31 // pred_check
          %p577 = pneg %p294
        $region66: #{text_encoder.1} parent=31 // pred_check_branch
          %579 = sbr.rel (%p577) target = $region68
        $region67: #{text_encoder.1} parent=31 // pred_region
          %p580 = scmp.lt.s32.totalorder %s41, 1
          %s581 = scalar_select %p580, %s41, 1
          %s582 = scalar_lea.vmem %s10, %s581
        $region68: #{text_encoder.1} parent=31 // pred_fallthru
          _
        // Predicated region
        $region69: #{text_encoder.1} parent=31 // pred_check
          %p583 = pneg %p320
        $region70: #{text_encoder.1} parent=31 // pred_check_branch
          %585 = sbr.rel (%p583) target = $region72
        $region71: #{text_encoder.1} parent=31 // pred_region
          %p586 = scmp.lt.s32.totalorder %s41, 1
          %s587 = scalar_select %p586, %s41, 1
          %s588 = smul.addr %s587, 4
          %s589 = smul.addr %s588, 4
          %s590 = scalar_lea.vmem %s11, %s589
        $region72: #{text_encoder.1} parent=31 // pred_fallthru
          _
        // Predicated region
        $region73: #{text_encoder.1} parent=31 // pred_check
          %p591 = pneg %p346
        $region74: #{text_encoder.1} parent=31 // pred_check_branch
          %593 = sbr.rel (%p591) target = $region76
        $region75: #{text_encoder.1} parent=31 // pred_region
          %p594 = scmp.lt.s32.totalorder %s41, 1
          %s595 = scalar_select %p594, %s41, 1
          %s596 = scalar_lea.vmem %s12, %s595
        $region76: #{text_encoder.1} parent=31 // pred_fallthru
          _
        // Predicated region
        $region77: #{text_encoder.1} parent=31 // pred_check
          %p597 = pneg %p372
        $region78: #{text_encoder.1} parent=31 // pred_check_branch
          %599 = sbr.rel (%p597) target = $region80
        $region79: #{text_encoder.1} parent=31 // pred_region
          %p600 = scmp.lt.s32.totalorder %s41, 1
          %s601 = scalar_select %p600, %s41, 1
          %s602 = smul.addr %s601, 16
          %s603 = smul.addr %s602, 4
          %s604 = scalar_lea.vmem %s13, %s603
        $region80: #{text_encoder.1} parent=31 // pred_fallthru
          _
        // Predicated region
        $region81: #{text_encoder.1} parent=31 // pred_check
          %p605 = pneg %p398
        $region82: #{text_encoder.1} parent=31 // pred_check_branch
          %607 = sbr.rel (%p605) target = $region84
        $region83: #{text_encoder.1} parent=31 // pred_region
          %p608 = scmp.lt.s32.totalorder %s41, 1
          %s609 = scalar_select %p608, %s41, 1
          %s610 = scalar_lea.vmem %s14, %s609
        $region84: #{text_encoder.1} parent=31 // pred_fallthru
          _
      $region32: #{text_encoder.1} parent=5 // pred_fallthru
        _
      %p611 = scmp.le.s32.totalorder 1, %s33
      %p612 = scmp.lt.s32.totalorder %s33, 5
      %p613 = pnand %p611, %p612
      %p614 = pneg %p613
      // Predicated region
      $region85: #{text_encoder.1} parent=5 // pred_check
        _
      $region86: #{text_encoder.1} parent=5 // pred_check_branch
        %616 = sbr.rel (%p613) target = $region88
      $region87: #{text_encoder.1} parent=5 // pred_region
        %s617 = ssub.s32 %s33, 1
        %p618 = scmp.lt.s32.totalorder %s42, 1
        %s619 = scalar_select %p618, %s42, 1
        %s620 = smul.addr %s619, 8
        %s621 = scalar_lea.vmem %s1, %s620
        %p622 = pneg %p71
        %p623 = pneg %p68
        %p624 = pneg %p92
        %p625 = pneg %p89
        %p626 = scmp.lt.s32.totalorder %s43, 1
        %s627 = scalar_select %p626, %s43, 1
        %s628 = scalar_lea.vmem %s3, %s627
        %p629 = pneg %p118
        %p630 = pneg %p115
        %p631 = scmp.lt.s32.totalorder %s43, 1
        %s632 = scalar_select %p631, %s43, 1
        %s633 = scalar_lea.vmem %s4, %s632
        %p634 = pneg %p144
        %p635 = pneg %p141
        %p636 = scmp.lt.s32.totalorder %s43, 1
        %s637 = scalar_select %p636, %s43, 1
        %s638 = smul.addr %s637, 4
        %s639 = smul.addr %s638, 4
        %s640 = scalar_lea.vmem %s5, %s639
        %p641 = pneg %p170
        %p642 = pneg %p167
        %p643 = scmp.lt.s32.totalorder %s43, 1
        %s644 = scalar_select %p643, %s43, 1
        %s645 = scalar_lea.vmem %s6, %s644
        %p646 = pneg %p196
        %p647 = pneg %p193
        %p648 = scmp.lt.s32.totalorder %s43, 1
        %s649 = scalar_select %p648, %s43, 1
        %s650 = smul.addr %s649, 4
        %s651 = smul.addr %s650, 4
        %s652 = scalar_lea.vmem %s7, %s651
        %p653 = pneg %p222
        %p654 = pneg %p219
        %p655 = scmp.lt.s32.totalorder %s43, 1
        %s656 = scalar_select %p655, %s43, 1
        %s657 = scalar_lea.vmem %s8, %s656
        %p658 = pneg %p248
        %p659 = pneg %p245
        %p660 = scmp.lt.s32.totalorder %s43, 1
        %s661 = scalar_select %p660, %s43, 1
        %s662 = scalar_lea.vmem %s9, %s661
        %p663 = pneg %p274
        %p664 = pneg %p271
        %p665 = scmp.lt.s32.totalorder %s43, 1
        %s666 = scalar_select %p665, %s43, 1
        %s667 = scalar_lea.vmem %s10, %s666
        %p668 = pneg %p300
        %p669 = pneg %p297
        %p670 = scmp.lt.s32.totalorder %s43, 1
        %s671 = scalar_select %p670, %s43, 1
        %s672 = smul.addr %s671, 4
        %s673 = smul.addr %s672, 4
        %s674 = scalar_lea.vmem %s11, %s673
        %p675 = pneg %p326
        %p676 = pneg %p323
        %p677 = scmp.lt.s32.totalorder %s43, 1
        %s678 = scalar_select %p677, %s43, 1
        %s679 = scalar_lea.vmem %s12, %s678
        %p680 = pneg %p352
        %p681 = pneg %p349
        %p682 = scmp.lt.s32.totalorder %s43, 1
        %s683 = scalar_select %p682, %s43, 1
        %s684 = smul.addr %s683, 16
        %s685 = smul.addr %s684, 4
        %s686 = scalar_lea.vmem %s13, %s685
        %p687 = pneg %p378
        %p688 = pneg %p375
        %p689 = scmp.lt.s32.totalorder %s43, 1
        %s690 = scalar_select %p689, %s43, 1
        %s691 = scalar_lea.vmem %s14, %s690
        %p692 = pneg %p404
        %p693 = pneg %p401
        %p694 = pneg %p425
        %p695 = pneg %p422
        %p696 = pneg %p446
        %p697 = pneg %p443
        %p698 = pneg %p467
        %p699 = pneg %p464
        %p700 = pneg %p493
        %p701 = pneg %p490
        %s702 = sand.u32 %s480, 1
        %s703 = scalar_lea.sflag [#allocation6], %s702
        %s704 = sand.u32 %s480, 1
        %s705 = scalar_lea.vmem [#allocation5], %s704
        %p706 = scmp.lt.s32.totalorder %s42, 1
        %s707 = scalar_select %p706, %s42, 1
        %s708 = smul.addr %s707, 8
        %s709 = scalar_lea.vmem %s1, %s708
        %p710 = scmp.lt.s32.totalorder %s43, 1
        %s711 = scalar_select %p710, %s43, 1
        %s712 = scalar_lea.vmem %s3, %s711
        %p713 = scmp.lt.s32.totalorder %s43, 1
        %s714 = scalar_select %p713, %s43, 1
        %s715 = scalar_lea.vmem %s4, %s714
        %p716 = scmp.lt.s32.totalorder %s43, 1
        %s717 = scalar_select %p716, %s43, 1
        %s718 = smul.addr %s717, 4
        %s719 = smul.addr %s718, 4
        %s720 = scalar_lea.vmem %s5, %s719
        %p721 = scmp.lt.s32.totalorder %s43, 1
        %s722 = scalar_select %p721, %s43, 1
        %s723 = scalar_lea.vmem %s6, %s722
        %p724 = scmp.lt.s32.totalorder %s43, 1
        %s725 = scalar_select %p724, %s43, 1
        %s726 = smul.addr %s725, 4
        %s727 = smul.addr %s726, 4
        %s728 = scalar_lea.vmem %s7, %s727
        %p729 = scmp.lt.s32.totalorder %s43, 1
        %s730 = scalar_select %p729, %s43, 1
        %s731 = scalar_lea.vmem %s8, %s730
        %p732 = scmp.lt.s32.totalorder %s43, 1
        %s733 = scalar_select %p732, %s43, 1
        %s734 = scalar_lea.vmem %s9, %s733
        %p735 = scmp.lt.s32.totalorder %s43, 1
        %s736 = scalar_select %p735, %s43, 1
        %s737 = scalar_lea.vmem %s10, %s736
        %p738 = scmp.lt.s32.totalorder %s43, 1
        %s739 = scalar_select %p738, %s43, 1
        %s740 = smul.addr %s739, 4
        %s741 = smul.addr %s740, 4
        %s742 = scalar_lea.vmem %s11, %s741
        %p743 = scmp.lt.s32.totalorder %s43, 1
        %s744 = scalar_select %p743, %s43, 1
        %s745 = scalar_lea.vmem %s12, %s744
        %p746 = scmp.lt.s32.totalorder %s43, 1
        %s747 = scalar_select %p746, %s43, 1
        %s748 = smul.addr %s747, 16
        %s749 = smul.addr %s748, 4
        %s750 = scalar_lea.vmem %s13, %s749
        %p751 = scmp.lt.s32.totalorder %s43, 1
        %s752 = scalar_select %p751, %s43, 1
        %s753 = scalar_lea.vmem %s14, %s752
        %p755 = scmp.eq.s32.totalorder %s43, 0
        // Predicated region
        $region89: #{text_encoder.1} parent=87 // pred_check
          %p756 = pneg %p755
        $region90: #{text_encoder.1} parent=87 // pred_check_branch
          %758 = sbr.rel (%p756) target = $region92
        $region91: #{text_encoder.1} parent=87 // pred_region
          %v759 = vld [vmem:[%s709] sm:$0xff]
          %v760 = vld [vmem:[%s2] sm:$0xff]
          %v761 = vadd.f32 %v759, %v760
          %vm762 = vcmask 261120
          %763 = vst.msk [vmem:[#allocation2] sm:$0xff] %vm762, %v761
        $region92: #{text_encoder.1} parent=87 // pred_fallthru
          _
        %v764 = vld [vmem:[#allocation2] sm:$0xff]
        %v765 = vlaneseq
        %v766 = vshrl.u32 %v765, 7
        %v767 = vlaneseq
        %v768 = vand.u32 %v767, 127
        %vm769 = vcmp.le.s32.totalorder %v768, %v766
        %v770 = vsel %vm769, 0.0, -1e+30
        %v771 = vld [vmem:[%s712] sm:$0x1]
        %v772 = vld [vmem:[%s715] sm:$0x1]
        %vm773 = vcmask 261120
        %v774 = vsel %vm773, %v764, 0.0
        %775 = vadd.xlane.f32.xlu0 %v774
        %v776 = vpop.xlane.xlu0 %775
        %v777 = vrcp.pop 32.0
        %v778 = vmul.f32 %v776, %v777
        %v779 = vsub.f32 %v764, %v778
        %v780 = vmul.f32 %v779, %v779
        %v781 = vsel %vm773, %v780, 0.0
        %782 = vadd.xlane.f32.xlu0 %v781
        %v783 = vpop.xlane.xlu0 %782
        %v784 = vmul.f32 %v783, %v777
        %v785 = vadd.f32 %v784, 1e-05
        %v786 = vrsqrt.pop %v785
        %v787 = vmul.f32 %v779, %v786
        %v789 = vlaneseq
        %v790 = vshrl.u32 %v789, 7
        %v791 = vsub.s32 0, %v790
        %v792 = vrot.slane %v771, %v791
        %v794 = vmul.f32 %v787, %v792
        %v796 = vlaneseq
        %v797 = vshrl.u32 %v796, 7
        %v798 = vsub.s32 0, %v797
        %v799 = vrot.slane %v772, %v798
        %v801 = vadd.f32 %v794, %v799
        %v802 = vpack.c.bf16 %v801, %v801
        %v803 = vld [vmem:[%s720] sm:$0xf]
        %v804 = vld [vmem:[%s720 + $0x4] sm:$0xf]
        %v805 = vld [vmem:[%s720 + $0x8] sm:$0xf]
        %v806 = vld [vmem:[%s720 + $0xc] sm:$0xf]
        %v807 = vld [vmem:[%s723] sm:$0x1]
        %v809 = vlaneseq
        %v810 = vshrl.u32 %v809, 7
        %v811 = vsub.s32 0, %v810
        %v812 = vrot.slane %v807, %v811
        %v818 = vunpack.c.l.b16 %v803
        %v819 = vunpack.c.l.b16 %v804
        %v820 = vunpack.c.l.b16 %v805
        %v821 = vunpack.c.l.b16 %v806
        %v822 = vpack.c.b16 %v819, %v818
        %v823 = vpack.c.b16 %v821, %v820
        %v827 = vsel %vm773, %v802, 0
        %829 = vmatprep.subr.bf16.mxu0 0
        %830 = vmatpush1.bf16.msra.mxu0 %v822
        %831 = vmatprep.subr.bf16.mxu0 0
        %832 = vmatpush1.bf16.msra.mxu0 %v823
        %833 = vmatprep.subr.bf16.mxu0 0
        %834 = vmatpush1.bf16.msra.mxu0 0
        %835 = vmatprep.subr.bf16.mxu0 0
        %836 = vmatpush1.bf16.msra.mxu0 0
        %837 = vmatprep.subr.bf16.mxu0 0
        %838 = vmatpush1.bf16.msra.mxu0 0
        %839 = vmatprep.subr.bf16.mxu0 0
        %840 = vmatpush1.bf16.msra.mxu0 0
        %841 = vmatprep.subr.bf16.mxu0 0
        %842 = vmatpush1.bf16.msra.mxu0 0
        %843 = vmatprep.subr.bf16.mxu0 0
        %844 = vmatpush1.bf16.msra.mxu0 0
        %845 = vmatprep.subr.bf16.mxu0 0
        %846 = vmatpush1.bf16.msra.mxu0 0
        %847 = vmatprep.subr.bf16.mxu0 0
        %848 = vmatpush1.bf16.msra.mxu0 0
        %849 = vmatprep.subr.bf16.mxu0 0
        %850 = vmatpush1.bf16.msra.mxu0 0
        %851 = vmatprep.subr.bf16.mxu0 0
        %852 = vmatpush1.bf16.msra.mxu0 0
        %853 = vmatprep.subr.bf16.mxu0 0
        %854 = vmatpush1.bf16.msra.mxu0 0
        %855 = vmatprep.subr.bf16.mxu0 0
        %856 = vmatpush1.bf16.msra.mxu0 0
        %857 = vmatprep.subr.bf16.mxu0 0
        %858 = vmatpush1.bf16.msra.mxu0 0
        %859 = vmatprep.subr.bf16.mxu0 0
        %860 = vmatpush1.bf16.msra.mxu0 0
        %861 = vmatprep.mubr.bf16.mxu0 0
        %862 = vmatmul.mubr.bf16.gmra.mrb[0].mxu0 %v827
        %v863 = vpop.f32.mrb[0].mxu0
        %v864 = vadd.f32 %v812, %v863
        %v865 = vpop.f32.mrb[0].mxu0
        %v866 = vpop.f32.mrb[0].mxu0
        %v867 = vpop.f32.mrb[0].mxu0
        %868 = vdwg.mxu0
        %v869 = vpack.c.bf16 %v864, %v864
        %871 = vrot.lane.b32.xlu0 %v869, 96
        %v872 = vpop.permute.xlu0 %871
        %vm873 = vcmask 64512
        %v875 = vsel %vm873, %v869, 0
        %v878 = vsel %vm873, %v872, 0
        %880 = vmatprep.subr.bf16.mxu0 0
        %881 = vmatpush1.bf16.xpose.msra.mxu0 %v878
        %882 = vmatprep.subr.bf16.mxu0 0
        %883 = vmatpush1.bf16.xpose.msra.mxu0 0
        %884 = vmatprep.subr.bf16.mxu0 0
        %885 = vmatpush1.bf16.xpose.msra.mxu0 0
        %886 = vmatprep.subr.bf16.mxu0 0
        %887 = vmatpush1.bf16.xpose.msra.mxu0 0
        %888 = vmatprep.subr.bf16.mxu0 0
        %889 = vmatpush1.bf16.xpose.msra.mxu0 0
        %890 = vmatprep.subr.bf16.mxu0 0
        %891 = vmatpush1.bf16.xpose.msra.mxu0 0
        %892 = vmatprep.subr.bf16.mxu0 0
        %893 = vmatpush1.bf16.xpose.msra.mxu0 0
        %894 = vmatprep.subr.bf16.mxu0 0
        %895 = vmatpush1.bf16.xpose.msra.mxu0 0
        %896 = vmatprep.subr.bf16.mxu0 0
        %897 = vmatpush1.bf16.xpose.msra.mxu0 0
        %898 = vmatprep.subr.bf16.mxu0 0
        %899 = vmatpush1.bf16.xpose.msra.mxu0 0
        %900 = vmatprep.subr.bf16.mxu0 0
        %901 = vmatpush1.bf16.xpose.msra.mxu0 0
        %902 = vmatprep.subr.bf16.mxu0 0
        %903 = vmatpush1.bf16.xpose.msra.mxu0 0
        %904 = vmatprep.subr.bf16.mxu0 0
        %905 = vmatpush1.bf16.xpose.msra.mxu0 0
        %906 = vmatprep.subr.bf16.mxu0 0
        %907 = vmatpush1.bf16.xpose.msra.mxu0 0
        %908 = vmatprep.subr.bf16.mxu0 0
        %909 = vmatpush1.bf16.xpose.msra.mxu0 0
        %910 = vmatprep.subr.bf16.mxu0 0
        %911 = vmatpush1.bf16.xpose.msra.mxu0 0
        %912 = vmatprep.mubr.bf16.mxu0 0
        %913 = vmatmul.mubr.bf16.gmra.mrb[0].mxu0 %v875
        %v914 = vpop.f32.mrb[0].mxu0
        %v915 = vadd.f32 %v770, %v914
        %v916 = vpop.f32.mrb[0].mxu0
        %v917 = vpop.f32.mrb[0].mxu0
        %v918 = vpop.f32.mrb[0].mxu0
        %919 = vdwg.mxu0
        %v920 = vsel %vm873, %v915, -inf
        %921 = vmax.xlane.f32.xlu0 %v920
        %v922 = vpop.xlane.xlu0 %921
        %v923 = vsub.f32 %v915, %v922
        %v924 = vmul.f32 %v923, 1.442695
        %v925 = vpow.pop %v924
        %v926 = vsel %vm873, %v925, 0.0
        %927 = vadd.xlane.f32.xlu0 %v926
        %v928 = vpop.xlane.xlu0 %927
        %v929 = vrcp.pop %v928
        %v930 = vmul.f32 %v925, %v929
        %v931 = vpack.c.bf16 %v930, %v930
        %932 = vrot.lane.b32.xlu0 %v869, 64
        %v933 = vpop.permute.xlu0 %932
        %v935 = vsel %vm873, %v931, 0
        %vm937 = vcmask 1043456
        %v939 = vsel %vm937, %v933, 0
        %941 = vmatprep.subr.bf16.mxu0 0
        %942 = vmatpush1.bf16.msra.mxu0 %v939
        %943 = vmatprep.subr.bf16.mxu0 0
        %944 = vmatpush1.bf16.msra.mxu0 0
        %945 = vmatprep.subr.bf16.mxu0 0
        %946 = vmatpush1.bf16.msra.mxu0 0
        %947 = vmatprep.subr.bf16.mxu0 0
        %948 = vmatpush1.bf16.msra.mxu0 0
        %949 = vmatprep.subr.bf16.mxu0 0
        %950 = vmatpush1.bf16.msra.mxu0 0
        %951 = vmatprep.subr.bf16.mxu0 0
        %952 = vmatpush1.bf16.msra.mxu0 0
        %953 = vmatprep.subr.bf16.mxu0 0
        %954 = vmatpush1.bf16.msra.mxu0 0
        %955 = vmatprep.subr.bf16.mxu0 0
        %956 = vmatpush1.bf16.msra.mxu0 0
        %957 = vmatprep.subr.bf16.mxu0 0
        %958 = vmatpush1.bf16.msra.mxu0 0
        %959 = vmatprep.subr.bf16.mxu0 0
        %960 = vmatpush1.bf16.msra.mxu0 0
        %961 = vmatprep.subr.bf16.mxu0 0
        %962 = vmatpush1.bf16.msra.mxu0 0
        %963 = vmatprep.subr.bf16.mxu0 0
        %964 = vmatpush1.bf16.msra.mxu0 0
        %965 = vmatprep.subr.bf16.mxu0 0
        %966 = vmatpush1.bf16.msra.mxu0 0
        %967 = vmatprep.subr.bf16.mxu0 0
        %968 = vmatpush1.bf16.msra.mxu0 0
        %969 = vmatprep.subr.bf16.mxu0 0
        %970 = vmatpush1.bf16.msra.mxu0 0
        %971 = vmatprep.subr.bf16.mxu0 0
        %972 = vmatpush1.bf16.msra.mxu0 0
        %973 = vmatprep.mubr.bf16.mxu0 0
        %974 = vmatmul.mubr.bf16.gmra.mrb[0].mxu0 %v935
        %v975 = vpop.f32.mrb[0].mxu0
        %v976 = vadd.f32 0.0, %v975
        %v977 = vpop.f32.mrb[0].mxu0
        %v978 = vpop.f32.mrb[0].mxu0
        %v979 = vpop.f32.mrb[0].mxu0
        %980 = vdwg.mxu0
        %981 = vrot.lane.b32.xlu0 %v869, 120
        %v982 = vpop.permute.xlu0 %981
        %983 = vrot.lane.b32.xlu0 %v869, 88
        %v984 = vpop.permute.xlu0 %983
        %v986 = vsel %vm873, %v982, 0
        %v989 = vsel %vm873, %v984, 0
        %991 = vmatprep.subr.bf16.mxu0 0
        %992 = vmatpush1.bf16.xpose.msra.mxu0 %v989
        %993 = vmatprep.subr.bf16.mxu0 0
        %994 = vmatpush1.bf16.xpose.msra.mxu0 0
        %995 = vmatprep.subr.bf16.mxu0 0
        %996 = vmatpush1.bf16.xpose.msra.mxu0 0
        %997 = vmatprep.subr.bf16.mxu0 0
        %998 = vmatpush1.bf16.xpose.msra.mxu0 0
        %999 = vmatprep.subr.bf16.mxu0 0
        %1000 = vmatpush1.bf16.xpose.msra.mxu0 0
        %1001 = vmatprep.subr.bf16.mxu0 0
        %1002 = vmatpush1.bf16.xpose.msra.mxu0 0
        %1003 = vmatprep.subr.bf16.mxu0 0
        %1004 = vmatpush1.bf16.xpose.msra.mxu0 0
        %1005 = vmatprep.subr.bf16.mxu0 0
        %1006 = vmatpush1.bf16.xpose.msra.mxu0 0
        %1007 = vmatprep.subr.bf16.mxu0 0
        %1008 = vmatpush1.bf16.xpose.msra.mxu0 0
        %1009 = vmatprep.subr.bf16.mxu0 0
        %1010 = vmatpush1.bf16.xpose.msra.mxu0 0
        %1011 = vmatprep.subr.bf16.mxu0 0
        %1012 = vmatpush1.bf16.xpose.msra.mxu0 0
        %1013 = vmatprep.subr.bf16.mxu0 0
        %1014 = vmatpush1.bf16.xpose.msra.mxu0 0
        %1015 = vmatprep.subr.bf16.mxu0 0
        %1016 = vmatpush1.bf16.xpose.msra.mxu0 0
        %1017 = vmatprep.subr.bf16.mxu0 0
        %1018 = vmatpush1.bf16.xpose.msra.mxu0 0
        %1019 = vmatprep.subr.bf16.mxu0 0
        %1020 = vmatpush1.bf16.xpose.msra.mxu0 0
        %1021 = vmatprep.subr.bf16.mxu0 0
        %1022 = vmatpush1.bf16.xpose.msra.mxu0 0
        %1023 = vmatprep.mubr.bf16.mxu0 0
        %1024 = vmatmul.mubr.bf16.gmra.mrb[0].mxu0 %v986
        %v1025 = vpop.f32.mrb[0].mxu0
        %v1026 = vadd.f32 %v770, %v1025
        %v1027 = vpop.f32.mrb[0].mxu0
        %v1028 = vpop.f32.mrb[0].mxu0
        %v1029 = vpop.f32.mrb[0].mxu0
        %1030 = vdwg.mxu0
        %v1031 = vsel %vm873, %v1026, -inf
        %1032 = vmax.xlane.f32.xlu0 %v1031
        %v1033 = vpop.xlane.xlu0 %1032
        %v1034 = vsub.f32 %v1026, %v1033
        %v1035 = vmul.f32 %v1034, 1.442695
        %v1036 = vpow.pop %v1035
        %v1037 = vsel %vm873, %v1036, 0.0
        %1038 = vadd.xlane.f32.xlu0 %v1037
        %v1039 = vpop.xlane.xlu0 %1038
        %v1040 = vrcp.pop %v1039
        %v1041 = vmul.f32 %v1036, %v1040
        %v1042 = vpack.c.bf16 %v1041, %v1041
        %1043 = vrot.lane.b32.xlu0 %v869, 56
        %v1044 = vpop.permute.xlu0 %1043
        %v1046 = vsel %vm873, %v1042, 0
        %v1049 = vsel %vm937, %v1044, 0
        %1051 = vmatprep.subr.bf16.mxu0 0
        %1052 = vmatpush1.bf16.msra.mxu0 %v1049
        %1053 = vmatprep.subr.bf16.mxu0 0
        %1054 = vmatpush1.bf16.msra.mxu0 0
        %1055 = vmatprep.subr.bf16.mxu0 0
        %1056 = vmatpush1.bf16.msra.mxu0 0
        %1057 = vmatprep.subr.bf16.mxu0 0
        %1058 = vmatpush1.bf16.msra.mxu0 0
        %1059 = vmatprep.subr.bf16.mxu0 0
        %1060 = vmatpush1.bf16.msra.mxu0 0
        %1061 = vmatprep.subr.bf16.mxu0 0
        %1062 = vmatpush1.bf16.msra.mxu0 0
        %1063 = vmatprep.subr.bf16.mxu0 0
        %1064 = vmatpush1.bf16.msra.mxu0 0
        %1065 = vmatprep.subr.bf16.mxu0 0
        %1066 = vmatpush1.bf16.msra.mxu0 0
        %1067 = vmatprep.subr.bf16.mxu0 0
        %1068 = vmatpush1.bf16.msra.mxu0 0
        %1069 = vmatprep.subr.bf16.mxu0 0
        %1070 = vmatpush1.bf16.msra.mxu0 0
        %1071 = vmatprep.subr.bf16.mxu0 0
        %1072 = vmatpush1.bf16.msra.mxu0 0
        %1073 = vmatprep.subr.bf16.mxu0 0
        %1074 = vmatpush1.bf16.msra.mxu0 0
        %1075 = vmatprep.subr.bf16.mxu0 0
        %1076 = vmatpush1.bf16.msra.mxu0 0
        %1077 = vmatprep.subr.bf16.mxu0 0
        %1078 = vmatpush1.bf16.msra.mxu0 0
        %1079 = vmatprep.subr.bf16.mxu0 0
        %1080 = vmatpush1.bf16.msra.mxu0 0
        %1081 = vmatprep.subr.bf16.mxu0 0
        %1082 = vmatpush1.bf16.msra.mxu0 0
        %1083 = vmatprep.mubr.bf16.mxu0 0
        %1084 = vmatmul.mubr.bf16.gmra.mrb[0].mxu0 %v1046
        %v1085 = vpop.f32.mrb[0].mxu0
        %v1086 = vadd.f32 0.0, %v1085
        %v1087 = vpop.f32.mrb[0].mxu0
        %v1088 = vpop.f32.mrb[0].mxu0
        %v1089 = vpop.f32.mrb[0].mxu0
        %1090 = vdwg.mxu0
        %1091 = vrot.lane.b32.xlu0 %v869, 112
        %v1092 = vpop.permute.xlu0 %1091
        %1093 = vrot.lane.b32.xlu0 %v869, 80
        %v1094 = vpop.permute.xlu0 %1093
        %v1096 = vsel %vm873, %v1092, 0
        %v1099 = vsel %vm873, %v1094, 0
        %1101 = vmatprep.subr.bf16.mxu0 0
        %1102 = vmatpush1.bf16.xpose.msra.mxu0 %v1099
        %1103 = vmatprep.subr.bf16.mxu0 0
        %1104 = vmatpush1.bf16.xpose.msra.mxu0 0
        %1105 = vmatprep.subr.bf16.mxu0 0
        %1106 = vmatpush1.bf16.xpose.msra.mxu0 0
        %1107 = vmatprep.subr.bf16.mxu0 0
        %1108 = vmatpush1.bf16.xpose.msra.mxu0 0
        %1109 = vmatprep.subr.bf16.mxu0 0
        %1110 = vmatpush1.bf16.xpose.msra.mxu0 0
        %1111 = vmatprep.subr.bf16.mxu0 0
        %1112 = vmatpush1.bf16.xpose.msra.mxu0 0
        %1113 = vmatprep.subr.bf16.mxu0 0
        %1114 = vmatpush1.bf16.xpose.msra.mxu0 0
        %1115 = vmatprep.subr.bf16.mxu0 0
        %1116 = vmatpush1.bf16.xpose.msra.mxu0 0
        %1117 = vmatprep.subr.bf16.mxu0 0
        %1118 = vmatpush1.bf16.xpose.msra.mxu0 0
        %1119 = vmatprep.subr.bf16.mxu0 0
        %1120 = vmatpush1.bf16.xpose.msra.mxu0 0
        %1121 = vmatprep.subr.bf16.mxu0 0
        %1122 = vmatpush1.bf16.xpose.msra.mxu0 0
        %1123 = vmatprep.subr.bf16.mxu0 0
        %1124 = vmatpush1.bf16.xpose.msra.mxu0 0
        %1125 = vmatprep.subr.bf16.mxu0 0
        %1126 = vmatpush1.bf16.xpose.msra.mxu0 0
        %1127 = vmatprep.subr.bf16.mxu0 0
        %1128 = vmatpush1.bf16.xpose.msra.mxu0 0
        %1129 = vmatprep.subr.bf16.mxu0 0
        %1130 = vmatpush1.bf16.xpose.msra.mxu0 0
        %1131 = vmatprep.subr.bf16.mxu0 0
        %1132 = vmatpush1.bf16.xpose.msra.mxu0 0
        %1133 = vmatprep.mubr.bf16.mxu0 0
        %1134 = vmatmul.mubr.bf16.gmra.mrb[0].mxu0 %v1096
        %v1135 = vpop.f32.mrb[0].mxu0
        %v1136 = vadd.f32 %v770, %v1135
        %v1137 = vpop.f32.mrb[0].mxu0
        %v1138 = vpop.f32.mrb[0].mxu0
        %v1139 = vpop.f32.mrb[0].mxu0
        %1140 = vdwg.mxu0
        %v1141 = vsel %vm873, %v1136, -inf
        %1142 = vmax.xlane.f32.xlu0 %v1141
        %v1143 = vpop.xlane.xlu0 %1142
        %v1144 = vsub.f32 %v1136, %v1143
        %v1145 = vmul.f32 %v1144, 1.442695
        %v1146 = vpow.pop %v1145
        %v1147 = vsel %vm873, %v1146, 0.0
        %1148 = vadd.xlane.f32.xlu0 %v1147
        %v1149 = vpop.xlane.xlu0 %1148
        %v1150 = vrcp.pop %v1149
        %v1151 = vmul.f32 %v1146, %v1150
        %v1152 = vpack.c.bf16 %v1151, %v1151
        %1153 = vrot.lane.b32.xlu0 %v869, 48
        %v1154 = vpop.permute.xlu0 %1153
        %v1156 = vsel %vm873, %v1152, 0
        %v1159 = vsel %vm937, %v1154, 0
        %1161 = vmatprep.subr.bf16.mxu0 0
        %1162 = vmatpush1.bf16.msra.mxu0 %v1159
        %1163 = vmatprep.subr.bf16.mxu0 0
        %1164 = vmatpush1.bf16.msra.mxu0 0
        %1165 = vmatprep.subr.bf16.mxu0 0
        %1166 = vmatpush1.bf16.msra.mxu0 0
        %1167 = vmatprep.subr.bf16.mxu0 0
        %1168 = vmatpush1.bf16.msra.mxu0 0
        %1169 = vmatprep.subr.bf16.mxu0 0
        %1170 = vmatpush1.bf16.msra.mxu0 0
        %1171 = vmatprep.subr.bf16.mxu0 0
        %1172 = vmatpush1.bf16.msra.mxu0 0
        %1173 = vmatprep.subr.bf16.mxu0 0
        %1174 = vmatpush1.bf16.msra.mxu0 0
        %1175 = vmatprep.subr.bf16.mxu0 0
        %1176 = vmatpush1.bf16.msra.mxu0 0
        %1177 = vmatprep.subr.bf16.mxu0 0
        %1178 = vmatpush1.bf16.msra.mxu0 0
        %1179 = vmatprep.subr.bf16.mxu0 0
        %1180 = vmatpush1.bf16.msra.mxu0 0
        %1181 = vmatprep.subr.bf16.mxu0 0
        %1182 = vmatpush1.bf16.msra.mxu0 0
        %1183 = vmatprep.subr.bf16.mxu0 0
        %1184 = vmatpush1.bf16.msra.mxu0 0
        %1185 = vmatprep.subr.bf16.mxu0 0
        %1186 = vmatpush1.bf16.msra.mxu0 0
        %1187 = vmatprep.subr.bf16.mxu0 0
        %1188 = vmatpush1.bf16.msra.mxu0 0
        %1189 = vmatprep.subr.bf16.mxu0 0
        %1190 = vmatpush1.bf16.msra.mxu0 0
        %1191 = vmatprep.subr.bf16.mxu0 0
        %1192 = vmatpush1.bf16.msra.mxu0 0
        %1193 = vmatprep.mubr.bf16.mxu0 0
        %1194 = vmatmul.mubr.bf16.gmra.mrb[0].mxu0 %v1156
        %v1195 = vpop.f32.mrb[0].mxu0
        %v1196 = vadd.f32 0.0, %v1195
        %v1197 = vpop.f32.mrb[0].mxu0
        %v1198 = vpop.f32.mrb[0].mxu0
        %v1199 = vpop.f32.mrb[0].mxu0
        %1200 = vdwg.mxu0
        %1201 = vrot.lane.b32.xlu0 %v869, 104
        %v1202 = vpop.permute.xlu0 %1201
        %1203 = vrot.lane.b32.xlu0 %v869, 72
        %v1204 = vpop.permute.xlu0 %1203
        %v1206 = vsel %vm873, %v1202, 0
        %v1209 = vsel %vm873, %v1204, 0
        %1211 = vmatprep.subr.bf16.mxu0 0
        %1212 = vmatpush1.bf16.xpose.msra.mxu0 %v1209
        %1213 = vmatprep.subr.bf16.mxu0 0
        %1214 = vmatpush1.bf16.xpose.msra.mxu0 0
        %1215 = vmatprep.subr.bf16.mxu0 0
        %1216 = vmatpush1.bf16.xpose.msra.mxu0 0
        %1217 = vmatprep.subr.bf16.mxu0 0
        %1218 = vmatpush1.bf16.xpose.msra.mxu0 0
        %1219 = vmatprep.subr.bf16.mxu0 0
        %1220 = vmatpush1.bf16.xpose.msra.mxu0 0
        %1221 = vmatprep.subr.bf16.mxu0 0
        %1222 = vmatpush1.bf16.xpose.msra.mxu0 0
        %1223 = vmatprep.subr.bf16.mxu0 0
        %1224 = vmatpush1.bf16.xpose.msra.mxu0 0
        %1225 = vmatprep.subr.bf16.mxu0 0
        %1226 = vmatpush1.bf16.xpose.msra.mxu0 0
        %1227 = vmatprep.subr.bf16.mxu0 0
        %1228 = vmatpush1.bf16.xpose.msra.mxu0 0
        %1229 = vmatprep.subr.bf16.mxu0 0
        %1230 = vmatpush1.bf16.xpose.msra.mxu0 0
        %1231 = vmatprep.subr.bf16.mxu0 0
        %1232 = vmatpush1.bf16.xpose.msra.mxu0 0
        %1233 = vmatprep.subr.bf16.mxu0 0
        %1234 = vmatpush1.bf16.xpose.msra.mxu0 0
        %1235 = vmatprep.subr.bf16.mxu0 0
        %1236 = vmatpush1.bf16.xpose.msra.mxu0 0
        %1237 = vmatprep.subr.bf16.mxu0 0
        %1238 = vmatpush1.bf16.xpose.msra.mxu0 0
        %1239 = vmatprep.subr.bf16.mxu0 0
        %1240 = vmatpush1.bf16.xpose.msra.mxu0 0
        %1241 = vmatprep.subr.bf16.mxu0 0
        %1242 = vmatpush1.bf16.xpose.msra.mxu0 0
        %1243 = vmatprep.mubr.bf16.mxu0 0
        %1244 = vmatmul.mubr.bf16.gmra.mrb[0].mxu0 %v1206
        %v1245 = vpop.f32.mrb[0].mxu0
        %v1246 = vadd.f32 %v770, %v1245
        %v1247 = vpop.f32.mrb[0].mxu0
        %v1248 = vpop.f32.mrb[0].mxu0
        %v1249 = vpop.f32.mrb[0].mxu0
        %1250 = vdwg.mxu0
        %v1251 = vsel %vm873, %v1246, -inf
        %1252 = vmax.xlane.f32.xlu0 %v1251
        %v1253 = vpop.xlane.xlu0 %1252
        %v1254 = vsub.f32 %v1246, %v1253
        %v1255 = vmul.f32 %v1254, 1.442695
        %v1256 = vpow.pop %v1255
        %v1257 = vsel %vm873, %v1256, 0.0
        %1258 = vadd.xlane.f32.xlu0 %v1257
        %v1259 = vpop.xlane.xlu0 %1258
        %v1260 = vrcp.pop %v1259
        %v1261 = vmul.f32 %v1256, %v1260
        %v1262 = vpack.c.bf16 %v1261, %v1261
        %1263 = vrot.lane.b32.xlu0 %v869, 40
        %v1264 = vpop.permute.xlu0 %1263
        %v1266 = vsel %vm873, %v1262, 0
        %v1269 = vsel %vm937, %v1264, 0
        %1271 = vmatprep.subr.bf16.mxu0 0
        %1272 = vmatpush1.bf16.msra.mxu0 %v1269
        %1273 = vmatprep.subr.bf16.mxu0 0
        %1274 = vmatpush1.bf16.msra.mxu0 0
        %1275 = vmatprep.subr.bf16.mxu0 0
        %1276 = vmatpush1.bf16.msra.mxu0 0
        %1277 = vmatprep.subr.bf16.mxu0 0
        %1278 = vmatpush1.bf16.msra.mxu0 0
        %1279 = vmatprep.subr.bf16.mxu0 0
        %1280 = vmatpush1.bf16.msra.mxu0 0
        %1281 = vmatprep.subr.bf16.mxu0 0
        %1282 = vmatpush1.bf16.msra.mxu0 0
        %1283 = vmatprep.subr.bf16.mxu0 0
        %1284 = vmatpush1.bf16.msra.mxu0 0
        %1285 = vmatprep.subr.bf16.mxu0 0
        %1286 = vmatpush1.bf16.msra.mxu0 0
        %1287 = vmatprep.subr.bf16.mxu0 0
        %1288 = vmatpush1.bf16.msra.mxu0 0
        %1289 = vmatprep.subr.bf16.mxu0 0
        %1290 = vmatpush1.bf16.msra.mxu0 0
        %1291 = vmatprep.subr.bf16.mxu0 0
        %1292 = vmatpush1.bf16.msra.mxu0 0
        %1293 = vmatprep.subr.bf16.mxu0 0
        %1294 = vmatpush1.bf16.msra.mxu0 0
        %1295 = vmatprep.subr.bf16.mxu0 0
        %1296 = vmatpush1.bf16.msra.mxu0 0
        %1297 = vmatprep.subr.bf16.mxu0 0
        %1298 = vmatpush1.bf16.msra.mxu0 0
        %1299 = vmatprep.subr.bf16.mxu0 0
        %1300 = vmatpush1.bf16.msra.mxu0 0
        %1301 = vmatprep.subr.bf16.mxu0 0
        %1302 = vmatpush1.bf16.msra.mxu0 0
        %1303 = vmatprep.mubr.bf16.mxu0 0
        %1304 = vmatmul.mubr.bf16.gmra.mrb[0].mxu0 %v1266
        %v1305 = vpop.f32.mrb[0].mxu0
        %v1306 = vadd.f32 0.0, %v1305
        %v1307 = vpop.f32.mrb[0].mxu0
        %v1308 = vpop.f32.mrb[0].mxu0
        %v1309 = vpop.f32.mrb[0].mxu0
        %1310 = vdwg.mxu0
        %1312 = vrot.lane.b32.xlu0 %v1086, 8
        %v1313 = vpop.permute.xlu0 %1312
        %1316 = vrot.lane.b32.xlu0 %v1196, 16
        %v1317 = vpop.permute.xlu0 %1316
        %1320 = vrot.lane.b32.xlu0 %v1306, 24
        %v1321 = vpop.permute.xlu0 %1320
        %v1323 = vsel %vm873, %v976, %v1313
        %vm1324 = vcmask 130048
        %v1325 = vsel %vm1324, %v1323, %v1317
        %vm1326 = vcmask 195584
        %v1327 = vsel %vm1326, %v1325, %v1321
        %v1328 = vpack.c.bf16 %v1327, %v1327
        %v1329 = vld [vmem:[%s728] sm:$0xf]
        %v1330 = vld [vmem:[%s728 + $0x4] sm:$0xf]
        %v1331 = vld [vmem:[%s728 + $0x8] sm:$0xf]
        %v1332 = vld [vmem:[%s728 + $0xc] sm:$0xf]
        %v1333 = vld [vmem:[%s731] sm:$0x1]
        %v1335 = vlaneseq
        %v1336 = vshrl.u32 %v1335, 7
        %v1337 = vsub.s32 0, %v1336
        %v1338 = vrot.slane %v1333, %v1337
        %v1344 = vunpack.c.l.b16 %v1329
        %v1345 = vunpack.c.l.b16 %v1330
        %v1346 = vunpack.c.l.b16 %v1331
        %v1347 = vunpack.c.l.b16 %v1332
        %v1348 = vpack.c.b16 %v1345, %v1344
        %v1349 = vpack.c.b16 %v1347, %v1346
        %v1353 = vsel %vm773, %v1328, 0
        %1355 = vmatprep.subr.bf16.mxu0 0
        %1356 = vmatpush1.bf16.msra.mxu0 %v1348
        %1357 = vmatprep.subr.bf16.mxu0 0
        %1358 = vmatpush1.bf16.msra.mxu0 %v1349
        %1359 = vmatprep.subr.bf16.mxu0 0
        %1360 = vmatpush1.bf16.msra.mxu0 0
        %1361 = vmatprep.subr.bf16.mxu0 0
        %1362 = vmatpush1.bf16.msra.mxu0 0
        %1363 = vmatprep.subr.bf16.mxu0 0
        %1364 = vmatpush1.bf16.msra.mxu0 0
        %1365 = vmatprep.subr.bf16.mxu0 0
        %1366 = vmatpush1.bf16.msra.mxu0 0
        %1367 = vmatprep.subr.bf16.mxu0 0
        %1368 = vmatpush1.bf16.msra.mxu0 0
        %1369 = vmatprep.subr.bf16.mxu0 0
        %1370 = vmatpush1.bf16.msra.mxu0 0
        %1371 = vmatprep.subr.bf16.mxu0 0
        %1372 = vmatpush1.bf16.msra.mxu0 0
        %1373 = vmatprep.subr.bf16.mxu0 0
        %1374 = vmatpush1.bf16.msra.mxu0 0
        %1375 = vmatprep.subr.bf16.mxu0 0
        %1376 = vmatpush1.bf16.msra.mxu0 0
        %1377 = vmatprep.subr.bf16.mxu0 0
        %1378 = vmatpush1.bf16.msra.mxu0 0
        %1379 = vmatprep.subr.bf16.mxu0 0
        %1380 = vmatpush1.bf16.msra.mxu0 0
        %1381 = vmatprep.subr.bf16.mxu0 0
        %1382 = vmatpush1.bf16.msra.mxu0 0
        %1383 = vmatprep.subr.bf16.mxu0 0
        %1384 = vmatpush1.bf16.msra.mxu0 0
        %1385 = vmatprep.subr.bf16.mxu0 0
        %1386 = vmatpush1.bf16.msra.mxu0 0
        %1387 = vmatprep.mubr.bf16.mxu0 0
        %1388 = vmatmul.mubr.bf16.gmra.mrb[0].mxu0 %v1353
        %v1389 = vpop.f32.mrb[0].mxu0
        %v1390 = vadd.f32 %v1338, %v1389
        %v1391 = vpop.f32.mrb[0].mxu0
        %v1392 = vpop.f32.mrb[0].mxu0
        %v1393 = vpop.f32.mrb[0].mxu0
        %1394 = vdwg.mxu0
        %v1395 = vadd.f32 %v764, %v1390
        %v1396 = vld [vmem:[%s734] sm:$0x1]
        %v1397 = vld [vmem:[%s737] sm:$0x1]
        %v1398 = vsel %vm773, %v1395, 0.0
        %1399 = vadd.xlane.f32.xlu0 %v1398
        %v1400 = vpop.xlane.xlu0 %1399
        %v1401 = vmul.f32 %v1400, %v777
        %v1402 = vsub.f32 %v1395, %v1401
        %v1403 = vmul.f32 %v1402, %v1402
        %v1404 = vsel %vm773, %v1403, 0.0
        %1405 = vadd.xlane.f32.xlu0 %v1404
        %v1406 = vpop.xlane.xlu0 %1405
        %v1407 = vmul.f32 %v1406, %v777
        %v1408 = vadd.f32 %v1407, 1e-05
        %v1409 = vrsqrt.pop %v1408
        %v1410 = vmul.f32 %v1402, %v1409
        %v1412 = vlaneseq
        %v1413 = vshrl.u32 %v1412, 7
        %v1414 = vsub.s32 0, %v1413
        %v1415 = vrot.slane %v1396, %v1414
        %v1417 = vmul.f32 %v1410, %v1415
        %v1419 = vlaneseq
        %v1420 = vshrl.u32 %v1419, 7
        %v1421 = vsub.s32 0, %v1420
        %v1422 = vrot.slane %v1397, %v1421
        %v1424 = vadd.f32 %v1417, %v1422
        %v1425 = vpack.c.bf16 %v1424, %v1424
        %v1426 = vld [vmem:[%s742] sm:$0xf]
        %v1427 = vld [vmem:[%s742 + $0x4] sm:$0xf]
        %v1428 = vld [vmem:[%s742 + $0x8] sm:$0xf]
        %v1429 = vld [vmem:[%s742 + $0xc] sm:$0xf]
        %v1430 = vld [vmem:[%s745] sm:$0x1]
        %v1432 = vlaneseq
        %v1433 = vshrl.u32 %v1432, 7
        %v1434 = vsub.s32 0, %v1433
        %v1435 = vrot.slane %v1430, %v1434
        %v1441 = vunpack.c.l.b16 %v1426
        %v1442 = vunpack.c.l.b16 %v1427
        %v1443 = vunpack.c.l.b16 %v1428
        %v1444 = vunpack.c.l.b16 %v1429
        %v1445 = vpack.c.b16 %v1442, %v1441
        %v1446 = vpack.c.b16 %v1444, %v1443
        %v1450 = vsel %vm773, %v1425, 0
        %1452 = vmatprep.subr.bf16.mxu0 0
        %1453 = vmatpush1.bf16.msra.mxu0 %v1445
        %1454 = vmatprep.subr.bf16.mxu0 0
        %1455 = vmatpush1.bf16.msra.mxu0 %v1446
        %1456 = vmatprep.subr.bf16.mxu0 0
        %1457 = vmatpush1.bf16.msra.mxu0 0
        %1458 = vmatprep.subr.bf16.mxu0 0
        %1459 = vmatpush1.bf16.msra.mxu0 0
        %1460 = vmatprep.subr.bf16.mxu0 0
        %1461 = vmatpush1.bf16.msra.mxu0 0
        %1462 = vmatprep.subr.bf16.mxu0 0
        %1463 = vmatpush1.bf16.msra.mxu0 0
        %1464 = vmatprep.subr.bf16.mxu0 0
        %1465 = vmatpush1.bf16.msra.mxu0 0
        %1466 = vmatprep.subr.bf16.mxu0 0
        %1467 = vmatpush1.bf16.msra.mxu0 0
        %1468 = vmatprep.subr.bf16.mxu0 0
        %1469 = vmatpush1.bf16.msra.mxu0 0
        %1470 = vmatprep.subr.bf16.mxu0 0
        %1471 = vmatpush1.bf16.msra.mxu0 0
        %1472 = vmatprep.subr.bf16.mxu0 0
        %1473 = vmatpush1.bf16.msra.mxu0 0
        %1474 = vmatprep.subr.bf16.mxu0 0
        %1475 = vmatpush1.bf16.msra.mxu0 0
        %1476 = vmatprep.subr.bf16.mxu0 0
        %1477 = vmatpush1.bf16.msra.mxu0 0
        %1478 = vmatprep.subr.bf16.mxu0 0
        %1479 = vmatpush1.bf16.msra.mxu0 0
        %1480 = vmatprep.subr.bf16.mxu0 0
        %1481 = vmatpush1.bf16.msra.mxu0 0
        %1482 = vmatprep.subr.bf16.mxu0 0
        %1483 = vmatpush1.bf16.msra.mxu0 0
        %1484 = vmatprep.mubr.bf16.mxu0 0
        %1485 = vmatmul.mubr.bf16.gmra.mrb[0].mxu0 %v1450
        %v1486 = vpop.f32.mrb[0].mxu0
        %v1487 = vadd.f32 %v1435, %v1486
        %v1488 = vpop.f32.mrb[0].mxu0
        %v1489 = vpop.f32.mrb[0].mxu0
        %v1490 = vpop.f32.mrb[0].mxu0
        %1491 = vdwg.mxu0
        %v1492 = vmul.f32 %v1487, 1.702
        %v1493 = vxor.u32 %v1492, 2147483648
        %v1494 = vmul.f32 %v1493, 1.442695
        %v1495 = vpow.pop %v1494
        %v1496 = vadd.f32 %v1495, 1.0
        %v1497 = vrcp.pop %v1496
        %v1498 = vmul.f32 1.0, %v1497
        %v1499 = vmul.f32 %v1487, %v1498
        %v1500 = vpack.c.bf16 %v1499, %v1499
        %v1501 = vld [vmem:[%s750] sm:$0xf]
        %v1502 = vld [vmem:[%s750 + $0x4] sm:$0xf]
        %v1503 = vld [vmem:[%s750 + $0x8] sm:$0xf]
        %v1504 = vld [vmem:[%s750 + $0xc] sm:$0xf]
        %v1505 = vld [vmem:[%s750 + $0x10] sm:$0xf]
        %v1506 = vld [vmem:[%s750 + $0x14] sm:$0xf]
        %v1507 = vld [vmem:[%s750 + $0x18] sm:$0xf]
        %v1508 = vld [vmem:[%s750 + $0x1c] sm:$0xf]
        %v1509 = vld [vmem:[%s750 + $0x20] sm:$0xf]
        %v1510 = vld [vmem:[%s750 + $0x24] sm:$0xf]
        %v1511 = vld [vmem:[%s750 + $0x28] sm:$0xf]
        %v1512 = vld [vmem:[%s750 + $0x2c] sm:$0xf]
        %v1513 = vld [vmem:[%s750 + $0x30] sm:$0xf]
        %v1514 = vld [vmem:[%s750 + $0x34] sm:$0xf]
        %v1515 = vld [vmem:[%s750 + $0x38] sm:$0xf]
        %v1516 = vld [vmem:[%s750 + $0x3c] sm:$0xf]
        %v1517 = vld [vmem:[%s753] sm:$0x1]
        %v1519 = vlaneseq
        %v1520 = vshrl.u32 %v1519, 7
        %v1521 = vsub.s32 0, %v1520
        %v1522 = vrot.slane %v1517, %v1521
        %v1540 = vunpack.c.l.b16 %v1501
        %v1541 = vunpack.c.l.b16 %v1502
        %v1542 = vunpack.c.l.b16 %v1503
        %v1543 = vunpack.c.l.b16 %v1504
        %v1544 = vunpack.c.l.b16 %v1505
        %v1545 = vunpack.c.l.b16 %v1506
        %v1546 = vunpack.c.l.b16 %v1507
        %v1547 = vunpack.c.l.b16 %v1508
        %v1548 = vunpack.c.l.b16 %v1509
        %v1549 = vunpack.c.l.b16 %v1510
        %v1550 = vunpack.c.l.b16 %v1511
        %v1551 = vunpack.c.l.b16 %v1512
        %v1552 = vunpack.c.l.b16 %v1513
        %v1553 = vunpack.c.l.b16 %v1514
        %v1554 = vunpack.c.l.b16 %v1515
        %v1555 = vunpack.c.l.b16 %v1516
        %v1556 = vpack.c.b16 %v1541, %v1540
        %v1557 = vpack.c.b16 %v1543, %v1542
        %v1558 = vpack.c.b16 %v1545, %v1544
        %v1559 = vpack.c.b16 %v1547, %v1546
        %v1560 = vpack.c.b16 %v1549, %v1548
        %v1561 = vpack.c.b16 %v1551, %v1550
        %v1562 = vpack.c.b16 %v1553, %v1552
        %v1563 = vpack.c.b16 %v1555, %v1554
        %1572 = vmatprep.subr.bf16.mxu0 0
        %1573 = vmatpush1.bf16.msra.mxu0 %v1556
        %1574 = vmatprep.subr.bf16.mxu0 0
        %1575 = vmatpush1.bf16.msra.mxu0 %v1557
        %1576 = vmatprep.subr.bf16.mxu0 0
        %1577 = vmatpush1.bf16.msra.mxu0 %v1558
        %1578 = vmatprep.subr.bf16.mxu0 0
        %1579 = vmatpush1.bf16.msra.mxu0 %v1559
        %1580 = vmatprep.subr.bf16.mxu0 0
        %1581 = vmatpush1.bf16.msra.mxu0 %v1560
        %1582 = vmatprep.subr.bf16.mxu0 0
        %1583 = vmatpush1.bf16.msra.mxu0 %v1561
        %1584 = vmatprep.subr.bf16.mxu0 0
        %1585 = vmatpush1.bf16.msra.mxu0 %v1562
        %1586 = vmatprep.subr.bf16.mxu0 0
        %1587 = vmatpush1.bf16.msra.mxu0 %v1563
        %1588 = vmatprep.subr.bf16.mxu0 0
        %1589 = vmatpush1.bf16.msra.mxu0 0
        %1590 = vmatprep.subr.bf16.mxu0 0
        %1591 = vmatpush1.bf16.msra.mxu0 0
        %1592 = vmatprep.subr.bf16.mxu0 0
        %1593 = vmatpush1.bf16.msra.mxu0 0
        %1594 = vmatprep.subr.bf16.mxu0 0
        %1595 = vmatpush1.bf16.msra.mxu0 0
        %1596 = vmatprep.subr.bf16.mxu0 0
        %1597 = vmatpush1.bf16.msra.mxu0 0
        %1598 = vmatprep.subr.bf16.mxu0 0
        %1599 = vmatpush1.bf16.msra.mxu0 0
        %1600 = vmatprep.subr.bf16.mxu0 0
        %1601 = vmatpush1.bf16.msra.mxu0 0
        %1602 = vmatprep.subr.bf16.mxu0 0
        %1603 = vmatpush1.bf16.msra.mxu0 0
        %1604 = vmatprep.mubr.bf16.mxu0 0
        %1605 = vmatmul.mubr.bf16.gmra.mrb[0].mxu0 %v1500
        %v1606 = vpop.f32.mrb[0].mxu0
        %v1607 = vadd.f32 %v1522, %v1606
        %v1608 = vpop.f32.mrb[0].mxu0
        %v1609 = vpop.f32.mrb[0].mxu0
        %v1610 = vpop.f32.mrb[0].mxu0
        %1611 = vdwg.mxu0
        %v1612 = vadd.f32 %v1395, %v1607
        %1613 = vst.msk [vmem:[#allocation2] sm:$0xff] %vm773, %v1612
        %p1614 = scmp.eq.s32.totalorder %s43, 1
        // Predicated region
        $region93: #{text_encoder.1} parent=87 // pred_check
          %p1615 = pneg %p1614
        $region94: #{text_encoder.1} parent=87 // pred_check_branch
          %1617 = sbr.rel (%p1615) target = $region96
        $region95: #{text_encoder.1} parent=87 // pred_region
          %s1618 = sld [smem:[#allocation4 + %s42]]
          %v1619 = vstv %s1618
          %vm1620 = vcmp.eq.s32.totalorder %v768, %v1619
          %v1621 = vsel %vm1620, 1, 0
          %v1622 = vcvt.s32.f32 %v1621
          %v1624 = vsel %vm873, %v1622, 0
          %1626 = vmatprep.subr.mxu0 0.0
          %1627 = vmatpush1.msra.mxu0 %v1612
          %1628 = vmatprep.subr.mxu0 0.0
          %1629 = vmatpush1.msra.mxu0 0.0
          %1630 = vmatprep.subr.mxu0 0.0
          %1631 = vmatpush1.msra.mxu0 0.0
          %1632 = vmatprep.subr.mxu0 0.0
          %1633 = vmatpush1.msra.mxu0 0.0
          %1634 = vmatprep.subr.mxu0 0.0
          %1635 = vmatpush1.msra.mxu0 0.0
          %1636 = vmatprep.subr.mxu0 0.0
          %1637 = vmatpush1.msra.mxu0 0.0
          %1638 = vmatprep.subr.mxu0 0.0
          %1639 = vmatpush1.msra.mxu0 0.0
          %1640 = vmatprep.subr.mxu0 0.0
          %1641 = vmatpush1.msra.mxu0 0.0
          %1642 = vmatprep.subr.mxu0 0.0
          %1643 = vmatpush1.msra.mxu0 0.0
          %1644 = vmatprep.subr.mxu0 0.0
          %1645 = vmatpush1.msra.mxu0 0.0
          %1646 = vmatprep.subr.mxu0 0.0
          %1647 = vmatpush1.msra.mxu0 0.0
          %1648 = vmatprep.subr.mxu0 0.0
          %1649 = vmatpush1.msra.mxu0 0.0
          %1650 = vmatprep.subr.mxu0 0.0
          %1651 = vmatpush1.msra.mxu0 0.0
          %1652 = vmatprep.subr.mxu0 0.0
          %1653 = vmatpush1.msra.mxu0 0.0
          %1654 = vmatprep.subr.mxu0 0.0
          %1655 = vmatpush1.msra.mxu0 0.0
          %1656 = vmatprep.subr.mxu0 0.0
          %1657 = vmatpush1.msra.mxu0 0.0
          %1658 = vmatprep.subr.mxu0 0.0
          %1659 = vmatpush1.msra.mxu0 0.0
          %1660 = vmatprep.subr.mxu0 0.0
          %1661 = vmatpush1.msra.mxu0 0.0
          %1662 = vmatprep.subr.mxu0 0.0
          %1663 = vmatpush1.msra.mxu0 0.0
          %1664 = vmatprep.subr.mxu0 0.0
          %1665 = vmatpush1.msra.mxu0 0.0
          %1666 = vmatprep.subr.mxu0 0.0
          %1667 = vmatpush1.msra.mxu0 0.0
          %1668 = vmatprep.subr.mxu0 0.0
          %1669 = vmatpush1.msra.mxu0 0.0
          %1670 = vmatprep.subr.mxu0 0.0
          %1671 = vmatpush1.msra.mxu0 0.0
          %1672 = vmatprep.subr.mxu0 0.0
          %1673 = vmatpush1.msra.mxu0 0.0
          %1674 = vmatprep.subr.mxu0 0.0
          %1675 = vmatpush1.msra.mxu0 0.0
          %1676 = vmatprep.subr.mxu0 0.0
          %1677 = vmatpush1.msra.mxu0 0.0
          %1678 = vmatprep.subr.mxu0 0.0
          %1679 = vmatpush1.msra.mxu0 0.0
          %1680 = vmatprep.subr.mxu0 0.0
          %1681 = vmatpush1.msra.mxu0 0.0
          %1682 = vmatprep.subr.mxu0 0.0
          %1683 = vmatpush1.msra.mxu0 0.0
          %1684 = vmatprep.subr.mxu0 0.0
          %1685 = vmatpush1.msra.mxu0 0.0
          %1686 = vmatprep.subr.mxu0 0.0
          %1687 = vmatpush1.msra.mxu0 0.0
          %1688 = vmatprep.subr.mxu0 0.0
          %1689 = vmatpush1.msra.mxu0 0.0
          %1690 = vmatprep.mubr.f32.mxu0 0.0
          %1691 = vmatmul.mubr.f32.gmra.mrb[0].mxu0 %v1624
          %v1692 = vpop.f32.mrb[0].mxu0
          %v1693 = vadd.f32 0.0, %v1692
          %v1694 = vpop.f32.mrb[0].mxu0
          %1695 = vdwg.mxu0
          %v1696 = vld [vmem:[%s15] sm:$0x1]
          %v1697 = vld [vmem:[%s16] sm:$0x1]
          %vm1698 = vcmask 253952
          %v1699 = vsel %vm1698, %v1693, 0.0
          %1700 = vadd.xlane.f32.xlu0 %v1699
          %v1701 = vpop.xlane.xlu0 %1700
          %v1702 = vmul.f32 %v1701, %v777
          %v1703 = vsub.f32 %v1693, %v1702
          %v1704 = vmul.f32 %v1703, %v1703
          %v1705 = vsel %vm1698, %v1704, 0.0
          %1706 = vadd.xlane.f32.xlu0 %v1705
          %v1707 = vpop.xlane.xlu0 %1706
          %v1708 = vmul.f32 %v1707, %v777
          %v1709 = vadd.f32 %v1708, 1e-05
          %v1710 = vrsqrt.pop %v1709
          %v1711 = vmul.f32 %v1703, %v1710
          %v1712 = vmul.f32 %v1711, %v1696
          %v1713 = vadd.f32 %v1712, %v1697
          %v1714 = vpack.c.bf16 %v1713, %v1713
          %v1715 = vld [vmem:[%s17] sm:$0xf]
          %v1716 = vld [vmem:[%s17 + $0x4] sm:$0xf]
          %v1717 = vld [vmem:[%s17 + $0x8] sm:$0xf]
          %v1718 = vld [vmem:[%s17 + $0xc] sm:$0xf]
          %v1723 = vunpack.c.l.b16 %v1715
          %v1724 = vunpack.c.l.b16 %v1716
          %v1725 = vunpack.c.l.b16 %v1717
          %v1726 = vunpack.c.l.b16 %v1718
          %v1727 = vpack.c.b16 %v1724, %v1723
          %v1728 = vpack.c.b16 %v1726, %v1725
          %v1732 = vsel %vm773, %v1714, 0
          %1734 = vmatprep.subr.bf16.mxu0 0
          %1735 = vmatpush1.bf16.msra.mxu0 %v1727
          %1736 = vmatprep.subr.bf16.mxu0 0
          %1737 = vmatpush1.bf16.msra.mxu0 %v1728
          %1738 = vmatprep.subr.bf16.mxu0 0
          %1739 = vmatpush1.bf16.msra.mxu0 0
          %1740 = vmatprep.subr.bf16.mxu0 0
          %1741 = vmatpush1.bf16.msra.mxu0 0
          %1742 = vmatprep.subr.bf16.mxu0 0
          %1743 = vmatpush1.bf16.msra.mxu0 0
          %1744 = vmatprep.subr.bf16.mxu0 0
          %1745 = vmatpush1.bf16.msra.mxu0 0
          %1746 = vmatprep.subr.bf16.mxu0 0
          %1747 = vmatpush1.bf16.msra.mxu0 0
          %1748 = vmatprep.subr.bf16.mxu0 0
          %1749 = vmatpush1.bf16.msra.mxu0 0
          %1750 = vmatprep.subr.bf16.mxu0 0
          %1751 = vmatpush1.bf16.msra.mxu0 0
          %1752 = vmatprep.subr.bf16.mxu0 0
          %1753 = vmatpush1.bf16.msra.mxu0 0
          %1754 = vmatprep.subr.bf16.mxu0 0
          %1755 = vmatpush1.bf16.msra.mxu0 0
          %1756 = vmatprep.subr.bf16.mxu0 0
          %1757 = vmatpush1.bf16.msra.mxu0 0
          %1758 = vmatprep.subr.bf16.mxu0 0
          %1759 = vmatpush1.bf16.msra.mxu0 0
          %1760 = vmatprep.subr.bf16.mxu0 0
          %1761 = vmatpush1.bf16.msra.mxu0 0
          %1762 = vmatprep.subr.bf16.mxu0 0
          %1763 = vmatpush1.bf16.msra.mxu0 0
          %1764 = vmatprep.subr.bf16.mxu0 0
          %1765 = vmatpush1.bf16.msra.mxu0 0
          %1766 = vmatprep.mubr.bf16.mxu0 0
          %1767 = vmatmul.mubr.bf16.gmra.mrb[0].mxu0 %v1732
          %v1768 = vpop.f32.mrb[0].mxu0
          %v1769 = vadd.f32 0.0, %v1768
          %v1770 = vpop.f32.mrb[0].mxu0
          %v1771 = vpop.f32.mrb[0].mxu0
          %v1772 = vpop.f32.mrb[0].mxu0
          %1773 = vdwg.mxu0
          %vm1774 = vcmask 122880
          %1775 = vst.msk [vmem:[%s705] sm:$0x1] %vm1774, %v1769
        $region96: #{text_encoder.1} parent=87 // pred_fallthru
          _
        %s1776 = sand.u32 %s480, 1
        %s1777 = scalar_lea.sflag [#allocation6], %s1776
        %s1778 = sand.u32 %s480, 1
        %s1779 = scalar_lea.vmem [#allocation5], %s1778
        // Predicated region
        $region97: #{text_encoder.1} parent=87 // pred_check
          %p1780 = pneg %p490
        $region98: #{text_encoder.1} parent=87 // pred_check_branch
          %1782 = sbr.rel (%p1780) target = $region100
        $region99: #{text_encoder.1} parent=87 // pred_region
          %s1784 = ssub.s32 16, 16
          %1785 = vsyncadd %s1777, %s1784
          %s1786 = smul.addr %s42, 16
          %s1787 = scalar_lea.hbm %s18, %s1786
          %s1789 = sshll.u32 %s1779, 4
          %s1790 = int_to_ptr.vmem [resolvable:$true] %s1789
          %1792 = dma.vmem_to_hbm [thread:$0]  %s1790, 16, %s1787, %s1777
        $region100: #{text_encoder.1} parent=87 // pred_fallthru
          _
      $region88: #{text_encoder.1} parent=5 // pred_fallthru
        _
      %p1793 = scmp.le.s32.totalorder 2, %s33
      // Predicated region
      $region101: #{text_encoder.1} parent=5 // pred_check
        %p1794 = pneg %p1793
      $region102: #{text_encoder.1} parent=5 // pred_check_branch
        %1796 = sbr.rel (%p1794) target = $region104
      $region103: #{text_encoder.1} parent=5 // pred_region
        %s1797 = ssub.s32 %s33, 2
        // Predicated region
        $region105: #{text_encoder.1} parent=103 // pred_check
          %p1798 = pneg %p496
        $region106: #{text_encoder.1} parent=103 // pred_check_branch
          %1800 = sbr.rel (%p1798) target = $region108
        $region107: #{text_encoder.1} parent=103 // pred_region
          %s1801 = sand.u32 %s481, 1
          %s1802 = scalar_lea.sflag [#allocation6], %s1801
          %s1803 = sand.u32 %s481, 1
          %s1804 = scalar_lea.vmem [#allocation5], %s1803
          %1805 = dma.done %s1802, 16
        $region108: #{text_encoder.1} parent=103 // pred_fallthru
          _
      $region104: #{text_encoder.1} parent=5 // pred_fallthru
        _
    $region6: #{text_encoder.1} parent=1 // loop_footer
      %s37 = sadd.s32 1, %s33
    $region7: #{text_encoder.1} parent=1 // loop_footer_branch
      %32 = sbr.rel target = $region3
    $region8: #{text_encoder.1} parent=1 // loop_exit
      _
    %1806 = vsyncpa [#allocation6], 1
    %s1807 = scalar_lea.sflag [#allocation6], 1
    %1808 = vsyncpa %s1807, 1

</llo_original>
